<compile_context>
chip_gen: v5e
topology: v5e:2x2
jax: 0.10.0
libtpu: 0.0.40
codegen_flags: <defaults>
</compile_context>

<pallas_src>
import functools

import jax
import jax.numpy as jnp
import numpy as np
from jax.experimental import pallas as pl
from jax.experimental.pallas import tpu as pltpu


def _silu(x):
    return x * jax.nn.sigmoid(x)


# ---------------------------------------------------------------------------
# Fused GhostConv kernel: 1x1 conv + BN + SiLU  ->  in-VMEM halo buffers  ->
# depthwise 5x5 + BN + SiLU  ->  channel concat, all in one HBM pass.
# ---------------------------------------------------------------------------
def ghost_fused_kernel(x_ref, w1_ref, s1_ref, b1_ref, wdw_ref, s2_ref, b2_ref,
                       out_ref, ypad_ref, *, H, W, TH):
    # Layouts (channels-major, pixels flattened onto the lane axis):
    #   x_ref    : (1, C1, H*W)             one input image, lane-dense pixels
    #   w1_ref   : (C_, C1)                 1x1 conv weight
    #   s1/b1    : (C_, 1)                  folded BN scale / bias for cv1
    #   wdw_ref  : (25, C_, 1)              depthwise 5x5 taps (row = ki*5 + kj)
    #   s2/b2    : (C_, 1)                  folded BN scale / bias for cv2
    #   out_ref  : (1, 2*C_, TH*W)          [:C_] = y, [C_:] = cv2(y) for this row strip
    #   ypad_ref : (S, C_, (TH+4)*W + 4)    f32 scratch: per-strip flat halo buffers of y
    #                                       (2-row halo top/bottom, 2 guard cells each end)
    C_ = w1_ref.shape[0]
    S = H // TH
    L = (TH + 4) * W + 4
    s = pl.program_id(1)

    # -------- strip 0: cv1 (1x1 conv on the MXU) + folded BN + SiLU, once per image ------
    # y stays in VMEM (never round-trips HBM) and is scattered into S per-strip halo
    # buffers so that every depthwise tap below becomes a static lane-offset slice.
    # TODO(synk): at production H, compute cv1 per strip (recomputing the 4 halo rows)
    # instead of one whole-image fill, so the scratch stays strip-sized.
    @pl.when(s == 0)
    def _():
        # At production channel counts, cast x/w1 to bf16 here (f32 accumulation stays).
        y = jnp.dot(w1_ref[...], x_ref[0], preferred_element_type=jnp.float32)
        y = _silu(y * s1_ref[...] + b1_ref[...])          # (C_, H*W) f32, lane-dense
        for t in range(S):                                # S is a static Python int
            lo, hi = t * TH - 2, t * TH + TH + 2          # y-row range incl. 2-row halo
            lo_c, hi_c = max(lo, 0), min(hi, H)
            r_lo, r_hi = lo_c - lo, hi_c - lo
            # Zero only the halo rows + guard cells; the interior is overwritten below.
            ypad_ref[t, :, 0:2 + r_lo * W] = jnp.zeros((C_, 2 + r_lo * W), jnp.float32)
            ypad_ref[t, :, 2 + r_hi * W:] = jnp.zeros((C_, L - 2 - r_hi * W), jnp.float32)
            ypad_ref[t, :, 2 + r_lo * W:2 + r_hi * W] = y[:, lo_c * W:hi_c * W]

    # -------- every strip: depthwise 5x5 (groups=C_) + BN + SiLU + channel concat --------
    buf = ypad_ref[s]                                     # (C_, L) this strip's halo buffer
    # Column index of every flat output position (masks the left/right conv edges).
    col = jax.lax.broadcasted_iota(jnp.int32, (C_, TH * W), 1) % W
    acc = jnp.zeros((C_, TH * W), jnp.float32)            # ~2 vregs at these shapes
    for kj in range(5):
        valid = jnp.logical_and(col + kj >= 2, col + kj < W + 2)
        for ki in range(5):
            off = ki * W + kj
            tap = buf[:, off:off + TH * W]                # static lane-offset slice
            acc = acc + jnp.where(valid, tap, 0.0) * wdw_ref[5 * ki + kj]
    y2 = _silu(acc * s2_ref[...] + b2_ref[...])           # (C_, TH*W)
    y_strip = buf[:, 2 * W + 2:2 * W + 2 + TH * W]        # cv1 rows owned by this strip
    # torch.cat((y, cv2(y)), dim=1): one full-lane (8,128)-tile store per strip.
    out_ref[0] = jnp.concatenate([y_strip, y2], axis=0).astype(out_ref.dtype)


def ghost_conv_pallas(x_cf, w1, s1, b1, wdw_taps, s2, b2, *, H, W, TH, out_dtype):
    N, C1, HW = x_cf.shape
    C_ = w1.shape[0]
    assert H * W == HW and H % TH == 0
    S = H // TH
    L = (TH + 4) * W + 4

    flops = N * HW * C_ * (2 * C1 + 2 * 25 + 8)           # cv1 matmul + 25-tap dw + BN/SiLU
    transcendentals = N * HW * 2 * C_                     # one sigmoid per element of y, y2
    bytes_accessed = (x_cf.size * x_cf.dtype.itemsize
                      + N * 2 * C_ * HW * np.dtype(out_dtype).itemsize
                      + (w1.size + wdw_taps.size + 4 * C_) * 4)

    kernel = functools.partial(ghost_fused_kernel, H=H, W=W, TH=TH)
    return pl.pallas_call(
        kernel,
        out_shape=jax.ShapeDtypeStruct((N, 2 * C_, HW), out_dtype),
        grid_spec=pltpu.PrefetchScalarGridSpec(
            num_scalar_prefetch=0,
            grid=(N, S),
            in_specs=[
                # whole image, block index constant across strips -> DMA'd once per image
                pl.BlockSpec((1, C1, HW), lambda n, s: (n, 0, 0)),
                pl.BlockSpec((C_, C1), lambda n, s: (0, 0)),
                pl.BlockSpec((C_, 1), lambda n, s: (0, 0)),
                pl.BlockSpec((C_, 1), lambda n, s: (0, 0)),
                pl.BlockSpec((25, C_, 1), lambda n, s: (0, 0, 0)),
                pl.BlockSpec((C_, 1), lambda n, s: (0, 0)),
                pl.BlockSpec((C_, 1), lambda n, s: (0, 0)),
            ],
            out_specs=pl.BlockSpec((1, 2 * C_, TH * W), lambda n, s: (n, 0, s)),
            scratch_shapes=[pltpu.VMEM((S, C_, L), jnp.float32)],
        ),
        compiler_params=pltpu.CompilerParams(
            # batch images are independent (v7x 2-TC split); strips carry the scratch dep.
            dimension_semantics=("parallel", "arbitrary"),
            # No vmem_limit_bytes: working set is ~100 KB, far below the default scoped
            # limit on every generation.  At production strip sizes set it explicitly but
            # leave headroom under v7x's 64 MiB physical VMEM per core.
        ),
        cost_estimate=pl.CostEstimate(
            flops=flops, transcendentals=transcendentals, bytes_accessed=bytes_accessed),
    )(x_cf, w1, s1, b1, wdw_taps, s2, b2)


# ---------------------------------------------------------------------------
# Parameter construction (deterministic, synthetic) with BN folded for inference.
# ---------------------------------------------------------------------------
def fold_bn(gamma, beta, mean, var, eps=1e-5):
    scale = gamma / jnp.sqrt(var + eps)
    bias = beta - mean * scale
    return scale, bias


def make_ghostconv_params(key, c1, c2):
    c_ = c2 // 2
    ks = jax.random.split(key, 8)
    w1 = 0.1 * jax.random.normal(ks[0], (c_, c1), jnp.float32)      # 1x1 conv (out, in)
    g1 = 1.0 + 0.1 * jax.random.normal(ks[1], (c_,), jnp.float32)
    be1 = 0.1 * jax.random.normal(ks[2], (c_,), jnp.float32)
    m1 = 0.1 * jax.random.normal(ks[3], (c_,), jnp.float32)
    v1 = jnp.abs(jax.random.normal(ks[4], (c_,), jnp.float32)) + 0.5
    s1, b1 = fold_bn(g1, be1, m1, v1)
    w2 = 0.1 * jax.random.normal(ks[5], (c_, 5, 5), jnp.float32)    # depthwise 5x5
    g2 = 1.0 + 0.1 * jax.random.normal(ks[6], (c_,), jnp.float32)
    be2 = 0.1 * jax.random.normal(ks[7], (c_,), jnp.float32)
    m2 = jnp.zeros((c_,), jnp.float32)
    v2 = jnp.ones((c_,), jnp.float32)
    s2, b2 = fold_bn(g2, be2, m2, v2)
    return (w1, s1, b1, w2, s2, b2)


# ---------------------------------------------------------------------------
# GhostConv forward (NCHW in / NCHW out, like the PyTorch module).  Only free
# reshapes at the boundary -- no transposes, no extra HBM passes over x or out.
# ---------------------------------------------------------------------------
def ghost_conv_forward(x_nchw, params):
    w1, s1, b1, w_dw, s2, b2 = params
    N, C1, H, W = x_nchw.shape
    C_ = w1.shape[0]
    TH = 8 if H % 8 == 0 else H           # 8-row strips -> TH*W = 128 lanes at W = 16

    x_cf = x_nchw.reshape(N, C1, H * W)                               # free reshape
    wdw_taps = jnp.transpose(w_dw.reshape(C_, 25), (1, 0)).reshape(25, C_, 1)
    out_flat = ghost_conv_pallas(
        x_cf, w1,
        s1.reshape(C_, 1), b1.reshape(C_, 1),
        wdw_taps,
        s2.reshape(C_, 1), b2.reshape(C_, 1),
        H=H, W=W, TH=TH, out_dtype=x_nchw.dtype)
    return out_flat.reshape(N, 2 * C_, H, W)                          # free reshape


# Pure-JAX reference (NCHW, inference-mode BN) for correctness checking.
def ghost_conv_reference(x_nchw, params):
    w1, s1, b1, w_dw, s2, b2 = params
    C_ = w1.shape[0]
    y = jnp.einsum("nchw,oc->nohw", x_nchw, w1,
                   precision=jax.lax.Precision.HIGHEST)
    y = _silu(y * s1.reshape(1, C_, 1, 1) + b1.reshape(1, C_, 1, 1))
    y2 = jax.lax.conv_general_dilated(
        y, w_dw.reshape(C_, 1, 5, 5),
        window_strides=(1, 1), padding=((2, 2), (2, 2)),
        dimension_numbers=("NCHW", "OIHW", "NCHW"),
        feature_group_count=C_,
        precision=jax.lax.Precision.HIGHEST)
    y2 = _silu(y2 * s2.reshape(1, C_, 1, 1) + b2.reshape(1, C_, 1, 1))
    return jnp.concatenate([y, y2], axis=1)


if __name__ == "__main__":
    key = jax.random.PRNGKey(0)
    k_x, k_p = jax.random.split(key)

    N, C1, H, W = 2, 4, 16, 16    # input x: NCHW
    C2 = 8                        # GhostConv(c1=4, c2=8) -> c_ = 4

    x = jax.random.normal(k_x, (N, C1, H, W), jnp.float32)
    params = make_ghostconv_params(k_p, C1, C2)

    out = jax.jit(ghost_conv_forward)(x, params)
    out = jax.block_until_ready(out)

    ref = ghost_conv_reference(x, params)
    assert out.shape == (N, C2, H, W), out.shape
    err = float(jnp.max(jnp.abs(out - ref)))
    assert err < 1e-3, f"mismatch vs reference: max abs err = {err}"

    print("KERNEL_OK")
</pallas_src>

<mosaic_0001>
module attributes {stable_mosaic.version = 11 : i64} {
  func.func @ghost_fused_kernel(%arg0: i32, %arg1: i32, %arg2: memref<1x4x256xf32, #tpu.memory_space<vmem>>, %arg3: memref<4x4xf32, #tpu.memory_space<vmem>>, %arg4: memref<4x1xf32, #tpu.memory_space<vmem>>, %arg5: memref<4x1xf32, #tpu.memory_space<vmem>>, %arg6: memref<25x4x1xf32, #tpu.memory_space<vmem>>, %arg7: memref<4x1xf32, #tpu.memory_space<vmem>>, %arg8: memref<4x1xf32, #tpu.memory_space<vmem>>, %arg9: memref<1x8x128xf32, #tpu.memory_space<vmem>>, %arg10: memref<2x4x196xf32, #tpu.memory_space<vmem>>) attributes {dimension_semantics = [#tpu.dimension_semantics<parallel>, #tpu.dimension_semantics<arbitrary>], iteration_bounds = array<i64: 2, 2>, scalar_prefetch = 0 : i64, scratch_operands = 1 : i64, tpu.core_type = #tpu.core_type<tc>, window_params = [{transform_indices = @transform_0, window_bounds = array<i64: 1, 4, 256>}, {pipeline_mode = #tpu.pipeline_mode<synchronous>, transform_indices = @transform_1, window_bounds = array<i64: 4, 4>}, {pipeline_mode = #tpu.pipeline_mode<synchronous>, transform_indices = @transform_2, window_bounds = array<i64: 4, 1>}, {pipeline_mode = #tpu.pipeline_mode<synchronous>, transform_indices = @transform_3, window_bounds = array<i64: 4, 1>}, {pipeline_mode = #tpu.pipeline_mode<synchronous>, transform_indices = @transform_4, window_bounds = array<i64: 25, 4, 1>}, {pipeline_mode = #tpu.pipeline_mode<synchronous>, transform_indices = @transform_5, window_bounds = array<i64: 4, 1>}, {pipeline_mode = #tpu.pipeline_mode<synchronous>, transform_indices = @transform_6, window_bounds = array<i64: 4, 1>}, {transform_indices = @transform_7, window_bounds = array<i64: 1, 8, 128>}]} {
    %c0_i32 = arith.constant 0 : i32
    %0 = arith.cmpi eq, %arg1, %c0_i32 : i32
    %1 = arith.extui %0 : i1 to i32
    %c0_i32_0 = arith.constant 0 : i32
    %2 = arith.cmpi ne, %1, %c0_i32_0 : i32
    scf.if %2 {
      %c0_106 = arith.constant 0 : index
      %c0_107 = arith.constant 0 : index
      %286 = vector.load %arg3[%c0_106, %c0_107] : memref<4x4xf32, #tpu.memory_space<vmem>>, vector<4x4xf32>
      %c0_108 = arith.constant 0 : index
      %c0_109 = arith.constant 0 : index
      %c0_110 = arith.constant 0 : index
      %287 = vector.load %arg2[%c0_108, %c0_109, %c0_110] : memref<1x4x256xf32, #tpu.memory_space<vmem>>, vector<1x4x256xf32>
      %288 = vector.shape_cast %287 : vector<1x4x256xf32> to vector<4x256xf32>
      %cst_111 = arith.constant dense<0.000000e+00> : vector<4x256xf32>
      %289 = tpu.matmul %286, %288, %cst_111 {dimension_numbers = #tpu.dot_dimension_numbers<[1], [0], [0], [1], [0, 0, 1, 1], [], []>} : vector<4x4xf32>, vector<4x256xf32>, vector<4x256xf32> -> vector<4x256xf32>
      %c0_112 = arith.constant 0 : index
      %c0_113 = arith.constant 0 : index
      %290 = vector.load %arg4[%c0_112, %c0_113] : memref<4x1xf32, #tpu.memory_space<vmem>>, vector<4x1xf32>
      %291 = vector.broadcast %290 : vector<4x1xf32> to vector<4x256xf32>
      %292 = arith.mulf %289, %291 : vector<4x256xf32>
      %c0_114 = arith.constant 0 : index
      %c0_115 = arith.constant 0 : index
      %293 = vector.load %arg5[%c0_114, %c0_115] : memref<4x1xf32, #tpu.memory_space<vmem>>, vector<4x1xf32>
      %294 = vector.broadcast %293 : vector<4x1xf32> to vector<4x256xf32>
      %295 = arith.addf %292, %294 : vector<4x256xf32>
      %296 = arith.negf %295 : vector<4x256xf32>
      %297 = math.exp %296 : vector<4x256xf32>
      %cst_116 = arith.constant 1.000000e+00 : f32
      %298 = vector.broadcast %cst_116 : f32 to vector<4x256xf32>
      %299 = arith.addf %298, %297 : vector<4x256xf32>
      %300 = arith.divf %298, %299 : vector<4x256xf32>
      %301 = arith.mulf %295, %300 : vector<4x256xf32>
      %cst_117 = arith.constant 0.000000e+00 : f32
      %302 = vector.broadcast %cst_117 : f32 to vector<4x34xf32>
      %c0_118 = arith.constant 0 : index
      %c0_119 = arith.constant 0 : index
      %c0_120 = arith.constant 0 : index
      %303 = vector.load %arg10[%c0_118, %c0_119, %c0_120] : memref<2x4x196xf32, #tpu.memory_space<vmem>>, vector<1x4x34xf32>
      %304 = vector.shape_cast %303 : vector<1x4x34xf32> to vector<4x34xf32>
      %305 = vector.shape_cast %302 : vector<4x34xf32> to vector<1x4x34xf32>
      tpu.vector_store %arg10[%c0_118, %c0_119, %c0_120], %305 {strides = array<i32>} : memref<2x4x196xf32, #tpu.memory_space<vmem>>, vector<1x4x34xf32>,
      %cst_121 = arith.constant 0.000000e+00 : f32
      %306 = vector.broadcast %cst_121 : f32 to vector<4x2xf32>
      %c0_122 = arith.constant 0 : index
      %c0_123 = arith.constant 0 : index
      %c194 = arith.constant 194 : index
      %307 = vector.load %arg10[%c0_122, %c0_123, %c194] : memref<2x4x196xf32, #tpu.memory_space<vmem>>, vector<1x4x2xf32>
      %308 = vector.shape_cast %307 : vector<1x4x2xf32> to vector<4x2xf32>
      %309 = vector.shape_cast %306 : vector<4x2xf32> to vector<1x4x2xf32>
      tpu.vector_store %arg10[%c0_122, %c0_123, %c194], %309 {strides = array<i32>} : memref<2x4x196xf32, #tpu.memory_space<vmem>>, vector<1x4x2xf32>,
      %310 = vector.extract_strided_slice %301 {offsets = [0, 0], sizes = [4, 160], strides = [1, 1]} : vector<4x256xf32> to vector<4x160xf32>
      %c0_124 = arith.constant 0 : index
      %c0_125 = arith.constant 0 : index
      %c34 = arith.constant 34 : index
      %311 = vector.load %arg10[%c0_124, %c0_125, %c34] : memref<2x4x196xf32, #tpu.memory_space<vmem>>, vector<1x4x160xf32>
      %312 = vector.shape_cast %311 : vector<1x4x160xf32> to vector<4x160xf32>
      %313 = vector.shape_cast %310 : vector<4x160xf32> to vector<1x4x160xf32>
      tpu.vector_store %arg10[%c0_124, %c0_125, %c34], %313 {strides = array<i32>} : memref<2x4x196xf32, #tpu.memory_space<vmem>>, vector<1x4x160xf32>,
      %cst_126 = arith.constant 0.000000e+00 : f32
      %314 = vector.broadcast %cst_126 : f32 to vector<4x2xf32>
      %c1_127 = arith.constant 1 : index
      %c0_128 = arith.constant 0 : index
      %c0_129 = arith.constant 0 : index
      %315 = vector.load %arg10[%c1_127, %c0_128, %c0_129] : memref<2x4x196xf32, #tpu.memory_space<vmem>>, vector<1x4x2xf32>
      %316 = vector.shape_cast %315 : vector<1x4x2xf32> to vector<4x2xf32>
      %317 = vector.shape_cast %314 : vector<4x2xf32> to vector<1x4x2xf32>
      tpu.vector_store %arg10[%c1_127, %c0_128, %c0_129], %317 {strides = array<i32>} : memref<2x4x196xf32, #tpu.memory_space<vmem>>, vector<1x4x2xf32>,
      %cst_130 = arith.constant 0.000000e+00 : f32
      %318 = vector.broadcast %cst_130 : f32 to vector<4x34xf32>
      %c1_131 = arith.constant 1 : index
      %c0_132 = arith.constant 0 : index
      %c162 = arith.constant 162 : index
      %319 = vector.load %arg10[%c1_131, %c0_132, %c162] : memref<2x4x196xf32, #tpu.memory_space<vmem>>, vector<1x4x34xf32>
      %320 = vector.shape_cast %319 : vector<1x4x34xf32> to vector<4x34xf32>
      %321 = vector.shape_cast %318 : vector<4x34xf32> to vector<1x4x34xf32>
      tpu.vector_store %arg10[%c1_131, %c0_132, %c162], %321 {strides = array<i32>} : memref<2x4x196xf32, #tpu.memory_space<vmem>>, vector<1x4x34xf32>,
      %322 = vector.extract_strided_slice %301 {offsets = [0, 96], sizes = [4, 160], strides = [1, 1]} : vector<4x256xf32> to vector<4x160xf32>
      %c1_133 = arith.constant 1 : index
      %c0_134 = arith.constant 0 : index
      %c2_135 = arith.constant 2 : index
      %323 = vector.load %arg10[%c1_133, %c0_134, %c2_135] : memref<2x4x196xf32, #tpu.memory_space<vmem>>, vector<1x4x160xf32>
      %324 = vector.shape_cast %323 : vector<1x4x160xf32> to vector<4x160xf32>
      %325 = vector.shape_cast %322 : vector<4x160xf32> to vector<1x4x160xf32>
      tpu.vector_store %arg10[%c1_133, %c0_134, %c2_135], %325 {strides = array<i32>} : memref<2x4x196xf32, #tpu.memory_space<vmem>>, vector<1x4x160xf32>,
    } else {
    }
    %3 = arith.index_cast %arg1 : i32 to index
    %c0 = arith.constant 0 : index
    %c0_1 = arith.constant 0 : index
    %4 = vector.load %arg10[%3, %c0, %c0_1] : memref<2x4x196xf32, #tpu.memory_space<vmem>>, vector<1x4x196xf32>
    %5 = vector.shape_cast %4 : vector<1x4x196xf32> to vector<4x196xf32>
    %6 = tpu.iota {dimensions = array<i32: 1>} : vector<4x128xi32>
    %c16_i32 = arith.constant 16 : i32
    %c0_i32_2 = arith.constant 0 : i32
    %7 = arith.cmpi eq, %c16_i32, %c0_i32_2 : i32
    %c1_i32 = arith.constant 1 : i32
    %8 = arith.select %7, %c1_i32, %c16_i32 : i32
    %9 = vector.broadcast %8 : i32 to vector<4x128xi32>
    %10 = arith.remsi %6, %9 : vector<4x128xi32>
    %c0_i32_3 = arith.constant 0 : i32
    %11 = vector.broadcast %c0_i32_3 : i32 to vector<4x128xi32>
    %12 = arith.cmpi ne, %10, %11 : vector<4x128xi32>
    %c0_i32_4 = arith.constant 0 : i32
    %13 = vector.broadcast %c0_i32_4 : i32 to vector<4x128xi32>
    %14 = arith.cmpi slt, %10, %13 : vector<4x128xi32>
    %c0_i32_5 = arith.constant 0 : i32
    %15 = arith.cmpi slt, %8, %c0_i32_5 : i32
    %16 = vector.broadcast %15 : i1 to vector<4x128xi1>
    %17 = vector.broadcast %16 : vector<4x128xi1> to vector<4x128xi1>
    %18 = arith.xori %14, %17 : vector<4x128xi1>
    %19 = arith.andi %18, %12 : vector<4x128xi1>
    %20 = vector.broadcast %8 : i32 to vector<4x128xi32>
    %21 = arith.addi %10, %20 : vector<4x128xi32>
    %22 = arith.select %19, %21, %10 : vector<4x128xi1>, vector<4x128xi32>
    %cst = arith.constant 0.000000e+00 : f32
    %23 = vector.broadcast %cst : f32 to vector<4x128xf32>
    %c0_i32_6 = arith.constant 0 : i32
    %24 = vector.broadcast %c0_i32_6 : i32 to vector<4x128xi32>
    %25 = arith.addi %22, %24 : vector<4x128xi32>
    %c2_i32 = arith.constant 2 : i32
    %26 = vector.broadcast %c2_i32 : i32 to vector<4x128xi32>
    %27 = arith.cmpi sge, %25, %26 : vector<4x128xi32>
    %c0_i32_7 = arith.constant 0 : i32
    %28 = vector.broadcast %c0_i32_7 : i32 to vector<4x128xi32>
    %29 = arith.addi %22, %28 : vector<4x128xi32>
    %c18_i32 = arith.constant 18 : i32
    %30 = vector.broadcast %c18_i32 : i32 to vector<4x128xi32>
    %31 = arith.cmpi slt, %29, %30 : vector<4x128xi32>
    %32 = arith.andi %27, %31 : vector<4x128xi1>
    %33 = vector.extract_strided_slice %5 {offsets = [0, 0], sizes = [4, 128], strides = [1, 1]} : vector<4x196xf32> to vector<4x128xf32>
    %cst_8 = arith.constant 0.000000e+00 : f32
    %34 = vector.broadcast %cst_8 : f32 to vector<4x128xf32>
    %35 = arith.select %32, %33, %34 : vector<4x128xi1>, vector<4x128xf32>
    %c0_9 = arith.constant 0 : index
    %c0_10 = arith.constant 0 : index
    %c0_11 = arith.constant 0 : index
    %36 = vector.load %arg6[%c0_9, %c0_10, %c0_11] : memref<25x4x1xf32, #tpu.memory_space<vmem>>, vector<1x4x1xf32>
    %37 = vector.shape_cast %36 : vector<1x4x1xf32> to vector<4x1xf32>
    %38 = vector.broadcast %37 : vector<4x1xf32> to vector<4x128xf32>
    %39 = arith.mulf %35, %38 : vector<4x128xf32>
    %40 = arith.addf %23, %39 : vector<4x128xf32>
    %41 = vector.extract_strided_slice %5 {offsets = [0, 16], sizes = [4, 128], strides = [1, 1]} : vector<4x196xf32> to vector<4x128xf32>
    %cst_12 = arith.constant 0.000000e+00 : f32
    %42 = vector.broadcast %cst_12 : f32 to vector<4x128xf32>
    %43 = arith.select %32, %41, %42 : vector<4x128xi1>, vector<4x128xf32>
    %c5 = arith.constant 5 : index
    %c0_13 = arith.constant 0 : index
    %c0_14 = arith.constant 0 : index
    %44 = vector.load %arg6[%c5, %c0_13, %c0_14] : memref<25x4x1xf32, #tpu.memory_space<vmem>>, vector<1x4x1xf32>
    %45 = vector.shape_cast %44 : vector<1x4x1xf32> to vector<4x1xf32>
    %46 = vector.broadcast %45 : vector<4x1xf32> to vector<4x128xf32>
    %47 = arith.mulf %43, %46 : vector<4x128xf32>
    %48 = arith.addf %40, %47 : vector<4x128xf32>
    %49 = vector.extract_strided_slice %5 {offsets = [0, 32], sizes = [4, 128], strides = [1, 1]} : vector<4x196xf32> to vector<4x128xf32>
    %cst_15 = arith.constant 0.000000e+00 : f32
    %50 = vector.broadcast %cst_15 : f32 to vector<4x128xf32>
    %51 = arith.select %32, %49, %50 : vector<4x128xi1>, vector<4x128xf32>
    %c10 = arith.constant 10 : index
    %c0_16 = arith.constant 0 : index
    %c0_17 = arith.constant 0 : index
    %52 = vector.load %arg6[%c10, %c0_16, %c0_17] : memref<25x4x1xf32, #tpu.memory_space<vmem>>, vector<1x4x1xf32>
    %53 = vector.shape_cast %52 : vector<1x4x1xf32> to vector<4x1xf32>
    %54 = vector.broadcast %53 : vector<4x1xf32> to vector<4x128xf32>
    %55 = arith.mulf %51, %54 : vector<4x128xf32>
    %56 = arith.addf %48, %55 : vector<4x128xf32>
    %57 = vector.extract_strided_slice %5 {offsets = [0, 48], sizes = [4, 128], strides = [1, 1]} : vector<4x196xf32> to vector<4x128xf32>
    %cst_18 = arith.constant 0.000000e+00 : f32
    %58 = vector.broadcast %cst_18 : f32 to vector<4x128xf32>
    %59 = arith.select %32, %57, %58 : vector<4x128xi1>, vector<4x128xf32>
    %c15 = arith.constant 15 : index
    %c0_19 = arith.constant 0 : index
    %c0_20 = arith.constant 0 : index
    %60 = vector.load %arg6[%c15, %c0_19, %c0_20] : memref<25x4x1xf32, #tpu.memory_space<vmem>>, vector<1x4x1xf32>
    %61 = vector.shape_cast %60 : vector<1x4x1xf32> to vector<4x1xf32>
    %62 = vector.broadcast %61 : vector<4x1xf32> to vector<4x128xf32>
    %63 = arith.mulf %59, %62 : vector<4x128xf32>
    %64 = arith.addf %56, %63 : vector<4x128xf32>
    %65 = vector.extract_strided_slice %5 {offsets = [0, 64], sizes = [4, 128], strides = [1, 1]} : vector<4x196xf32> to vector<4x128xf32>
    %cst_21 = arith.constant 0.000000e+00 : f32
    %66 = vector.broadcast %cst_21 : f32 to vector<4x128xf32>
    %67 = arith.select %32, %65, %66 : vector<4x128xi1>, vector<4x128xf32>
    %c20 = arith.constant 20 : index
    %c0_22 = arith.constant 0 : index
    %c0_23 = arith.constant 0 : index
    %68 = vector.load %arg6[%c20, %c0_22, %c0_23] : memref<25x4x1xf32, #tpu.memory_space<vmem>>, vector<1x4x1xf32>
    %69 = vector.shape_cast %68 : vector<1x4x1xf32> to vector<4x1xf32>
    %70 = vector.broadcast %69 : vector<4x1xf32> to vector<4x128xf32>
    %71 = arith.mulf %67, %70 : vector<4x128xf32>
    %72 = arith.addf %64, %71 : vector<4x128xf32>
    %c1_i32_24 = arith.constant 1 : i32
    %73 = vector.broadcast %c1_i32_24 : i32 to vector<4x128xi32>
    %74 = arith.addi %22, %73 : vector<4x128xi32>
    %c2_i32_25 = arith.constant 2 : i32
    %75 = vector.broadcast %c2_i32_25 : i32 to vector<4x128xi32>
    %76 = arith.cmpi sge, %74, %75 : vector<4x128xi32>
    %c1_i32_26 = arith.constant 1 : i32
    %77 = vector.broadcast %c1_i32_26 : i32 to vector<4x128xi32>
    %78 = arith.addi %22, %77 : vector<4x128xi32>
    %c18_i32_27 = arith.constant 18 : i32
    %79 = vector.broadcast %c18_i32_27 : i32 to vector<4x128xi32>
    %80 = arith.cmpi slt, %78, %79 : vector<4x128xi32>
    %81 = arith.andi %76, %80 : vector<4x128xi1>
    %82 = vector.extract_strided_slice %5 {offsets = [0, 1], sizes = [4, 128], strides = [1, 1]} : vector<4x196xf32> to vector<4x128xf32>
    %cst_28 = arith.constant 0.000000e+00 : f32
    %83 = vector.broadcast %cst_28 : f32 to vector<4x128xf32>
    %84 = arith.select %81, %82, %83 : vector<4x128xi1>, vector<4x128xf32>
    %c1 = arith.constant 1 : index
    %c0_29 = arith.constant 0 : index
    %c0_30 = arith.constant 0 : index
    %85 = vector.load %arg6[%c1, %c0_29, %c0_30] : memref<25x4x1xf32, #tpu.memory_space<vmem>>, vector<1x4x1xf32>
    %86 = vector.shape_cast %85 : vector<1x4x1xf32> to vector<4x1xf32>
    %87 = vector.broadcast %86 : vector<4x1xf32> to vector<4x128xf32>
    %88 = arith.mulf %84, %87 : vector<4x128xf32>
    %89 = arith.addf %72, %88 : vector<4x128xf32>
    %90 = vector.extract_strided_slice %5 {offsets = [0, 17], sizes = [4, 128], strides = [1, 1]} : vector<4x196xf32> to vector<4x128xf32>
    %cst_31 = arith.constant 0.000000e+00 : f32
    %91 = vector.broadcast %cst_31 : f32 to vector<4x128xf32>
    %92 = arith.select %81, %90, %91 : vector<4x128xi1>, vector<4x128xf32>
    %c6 = arith.constant 6 : index
    %c0_32 = arith.constant 0 : index
    %c0_33 = arith.constant 0 : index
    %93 = vector.load %arg6[%c6, %c0_32, %c0_33] : memref<25x4x1xf32, #tpu.memory_space<vmem>>, vector<1x4x1xf32>
    %94 = vector.shape_cast %93 : vector<1x4x1xf32> to vector<4x1xf32>
    %95 = vector.broadcast %94 : vector<4x1xf32> to vector<4x128xf32>
    %96 = arith.mulf %92, %95 : vector<4x128xf32>
    %97 = arith.addf %89, %96 : vector<4x128xf32>
    %98 = vector.extract_strided_slice %5 {offsets = [0, 33], sizes = [4, 128], strides = [1, 1]} : vector<4x196xf32> to vector<4x128xf32>
    %cst_34 = arith.constant 0.000000e+00 : f32
    %99 = vector.broadcast %cst_34 : f32 to vector<4x128xf32>
    %100 = arith.select %81, %98, %99 : vector<4x128xi1>, vector<4x128xf32>
    %c11 = arith.constant 11 : index
    %c0_35 = arith.constant 0 : index
    %c0_36 = arith.constant 0 : index
    %101 = vector.load %arg6[%c11, %c0_35, %c0_36] : memref<25x4x1xf32, #tpu.memory_space<vmem>>, vector<1x4x1xf32>
    %102 = vector.shape_cast %101 : vector<1x4x1xf32> to vector<4x1xf32>
    %103 = vector.broadcast %102 : vector<4x1xf32> to vector<4x128xf32>
    %104 = arith.mulf %100, %103 : vector<4x128xf32>
    %105 = arith.addf %97, %104 : vector<4x128xf32>
    %106 = vector.extract_strided_slice %5 {offsets = [0, 49], sizes = [4, 128], strides = [1, 1]} : vector<4x196xf32> to vector<4x128xf32>
    %cst_37 = arith.constant 0.000000e+00 : f32
    %107 = vector.broadcast %cst_37 : f32 to vector<4x128xf32>
    %108 = arith.select %81, %106, %107 : vector<4x128xi1>, vector<4x128xf32>
    %c16 = arith.constant 16 : index
    %c0_38 = arith.constant 0 : index
    %c0_39 = arith.constant 0 : index
    %109 = vector.load %arg6[%c16, %c0_38, %c0_39] : memref<25x4x1xf32, #tpu.memory_space<vmem>>, vector<1x4x1xf32>
    %110 = vector.shape_cast %109 : vector<1x4x1xf32> to vector<4x1xf32>
    %111 = vector.broadcast %110 : vector<4x1xf32> to vector<4x128xf32>
    %112 = arith.mulf %108, %111 : vector<4x128xf32>
    %113 = arith.addf %105, %112 : vector<4x128xf32>
    %114 = vector.extract_strided_slice %5 {offsets = [0, 65], sizes = [4, 128], strides = [1, 1]} : vector<4x196xf32> to vector<4x128xf32>
    %cst_40 = arith.constant 0.000000e+00 : f32
    %115 = vector.broadcast %cst_40 : f32 to vector<4x128xf32>
    %116 = arith.select %81, %114, %115 : vector<4x128xi1>, vector<4x128xf32>
    %c21 = arith.constant 21 : index
    %c0_41 = arith.constant 0 : index
    %c0_42 = arith.constant 0 : index
    %117 = vector.load %arg6[%c21, %c0_41, %c0_42] : memref<25x4x1xf32, #tpu.memory_space<vmem>>, vector<1x4x1xf32>
    %118 = vector.shape_cast %117 : vector<1x4x1xf32> to vector<4x1xf32>
    %119 = vector.broadcast %118 : vector<4x1xf32> to vector<4x128xf32>
    %120 = arith.mulf %116, %119 : vector<4x128xf32>
    %121 = arith.addf %113, %120 : vector<4x128xf32>
    %c2_i32_43 = arith.constant 2 : i32
    %122 = vector.broadcast %c2_i32_43 : i32 to vector<4x128xi32>
    %123 = arith.addi %22, %122 : vector<4x128xi32>
    %c2_i32_44 = arith.constant 2 : i32
    %124 = vector.broadcast %c2_i32_44 : i32 to vector<4x128xi32>
    %125 = arith.cmpi sge, %123, %124 : vector<4x128xi32>
    %c2_i32_45 = arith.constant 2 : i32
    %126 = vector.broadcast %c2_i32_45 : i32 to vector<4x128xi32>
    %127 = arith.addi %22, %126 : vector<4x128xi32>
    %c18_i32_46 = arith.constant 18 : i32
    %128 = vector.broadcast %c18_i32_46 : i32 to vector<4x128xi32>
    %129 = arith.cmpi slt, %127, %128 : vector<4x128xi32>
    %130 = arith.andi %125, %129 : vector<4x128xi1>
    %131 = vector.extract_strided_slice %5 {offsets = [0, 2], sizes = [4, 128], strides = [1, 1]} : vector<4x196xf32> to vector<4x128xf32>
    %cst_47 = arith.constant 0.000000e+00 : f32
    %132 = vector.broadcast %cst_47 : f32 to vector<4x128xf32>
    %133 = arith.select %130, %131, %132 : vector<4x128xi1>, vector<4x128xf32>
    %c2 = arith.constant 2 : index
    %c0_48 = arith.constant 0 : index
    %c0_49 = arith.constant 0 : index
    %134 = vector.load %arg6[%c2, %c0_48, %c0_49] : memref<25x4x1xf32, #tpu.memory_space<vmem>>, vector<1x4x1xf32>
    %135 = vector.shape_cast %134 : vector<1x4x1xf32> to vector<4x1xf32>
    %136 = vector.broadcast %135 : vector<4x1xf32> to vector<4x128xf32>
    %137 = arith.mulf %133, %136 : vector<4x128xf32>
    %138 = arith.addf %121, %137 : vector<4x128xf32>
    %139 = vector.extract_strided_slice %5 {offsets = [0, 18], sizes = [4, 128], strides = [1, 1]} : vector<4x196xf32> to vector<4x128xf32>
    %cst_50 = arith.constant 0.000000e+00 : f32
    %140 = vector.broadcast %cst_50 : f32 to vector<4x128xf32>
    %141 = arith.select %130, %139, %140 : vector<4x128xi1>, vector<4x128xf32>
    %c7 = arith.constant 7 : index
    %c0_51 = arith.constant 0 : index
    %c0_52 = arith.constant 0 : index
    %142 = vector.load %arg6[%c7, %c0_51, %c0_52] : memref<25x4x1xf32, #tpu.memory_space<vmem>>, vector<1x4x1xf32>
    %143 = vector.shape_cast %142 : vector<1x4x1xf32> to vector<4x1xf32>
    %144 = vector.broadcast %143 : vector<4x1xf32> to vector<4x128xf32>
    %145 = arith.mulf %141, %144 : vector<4x128xf32>
    %146 = arith.addf %138, %145 : vector<4x128xf32>
    %147 = vector.extract_strided_slice %5 {offsets = [0, 34], sizes = [4, 128], strides = [1, 1]} : vector<4x196xf32> to vector<4x128xf32>
    %cst_53 = arith.constant 0.000000e+00 : f32
    %148 = vector.broadcast %cst_53 : f32 to vector<4x128xf32>
    %149 = arith.select %130, %147, %148 : vector<4x128xi1>, vector<4x128xf32>
    %c12 = arith.constant 12 : index
    %c0_54 = arith.constant 0 : index
    %c0_55 = arith.constant 0 : index
    %150 = vector.load %arg6[%c12, %c0_54, %c0_55] : memref<25x4x1xf32, #tpu.memory_space<vmem>>, vector<1x4x1xf32>
    %151 = vector.shape_cast %150 : vector<1x4x1xf32> to vector<4x1xf32>
    %152 = vector.broadcast %151 : vector<4x1xf32> to vector<4x128xf32>
    %153 = arith.mulf %149, %152 : vector<4x128xf32>
    %154 = arith.addf %146, %153 : vector<4x128xf32>
    %155 = vector.extract_strided_slice %5 {offsets = [0, 50], sizes = [4, 128], strides = [1, 1]} : vector<4x196xf32> to vector<4x128xf32>
    %cst_56 = arith.constant 0.000000e+00 : f32
    %156 = vector.broadcast %cst_56 : f32 to vector<4x128xf32>
    %157 = arith.select %130, %155, %156 : vector<4x128xi1>, vector<4x128xf32>
    %c17 = arith.constant 17 : index
    %c0_57 = arith.constant 0 : index
    %c0_58 = arith.constant 0 : index
    %158 = vector.load %arg6[%c17, %c0_57, %c0_58] : memref<25x4x1xf32, #tpu.memory_space<vmem>>, vector<1x4x1xf32>
    %159 = vector.shape_cast %158 : vector<1x4x1xf32> to vector<4x1xf32>
    %160 = vector.broadcast %159 : vector<4x1xf32> to vector<4x128xf32>
    %161 = arith.mulf %157, %160 : vector<4x128xf32>
    %162 = arith.addf %154, %161 : vector<4x128xf32>
    %163 = vector.extract_strided_slice %5 {offsets = [0, 66], sizes = [4, 128], strides = [1, 1]} : vector<4x196xf32> to vector<4x128xf32>
    %cst_59 = arith.constant 0.000000e+00 : f32
    %164 = vector.broadcast %cst_59 : f32 to vector<4x128xf32>
    %165 = arith.select %130, %163, %164 : vector<4x128xi1>, vector<4x128xf32>
    %c22 = arith.constant 22 : index
    %c0_60 = arith.constant 0 : index
    %c0_61 = arith.constant 0 : index
    %166 = vector.load %arg6[%c22, %c0_60, %c0_61] : memref<25x4x1xf32, #tpu.memory_space<vmem>>, vector<1x4x1xf32>
    %167 = vector.shape_cast %166 : vector<1x4x1xf32> to vector<4x1xf32>
    %168 = vector.broadcast %167 : vector<4x1xf32> to vector<4x128xf32>
    %169 = arith.mulf %165, %168 : vector<4x128xf32>
    %170 = arith.addf %162, %169 : vector<4x128xf32>
    %c3_i32 = arith.constant 3 : i32
    %171 = vector.broadcast %c3_i32 : i32 to vector<4x128xi32>
    %172 = arith.addi %22, %171 : vector<4x128xi32>
    %c2_i32_62 = arith.constant 2 : i32
    %173 = vector.broadcast %c2_i32_62 : i32 to vector<4x128xi32>
    %174 = arith.cmpi sge, %172, %173 : vector<4x128xi32>
    %c3_i32_63 = arith.constant 3 : i32
    %175 = vector.broadcast %c3_i32_63 : i32 to vector<4x128xi32>
    %176 = arith.addi %22, %175 : vector<4x128xi32>
    %c18_i32_64 = arith.constant 18 : i32
    %177 = vector.broadcast %c18_i32_64 : i32 to vector<4x128xi32>
    %178 = arith.cmpi slt, %176, %177 : vector<4x128xi32>
    %179 = arith.andi %174, %178 : vector<4x128xi1>
    %180 = vector.extract_strided_slice %5 {offsets = [0, 3], sizes = [4, 128], strides = [1, 1]} : vector<4x196xf32> to vector<4x128xf32>
    %cst_65 = arith.constant 0.000000e+00 : f32
    %181 = vector.broadcast %cst_65 : f32 to vector<4x128xf32>
    %182 = arith.select %179, %180, %181 : vector<4x128xi1>, vector<4x128xf32>
    %c3 = arith.constant 3 : index
    %c0_66 = arith.constant 0 : index
    %c0_67 = arith.constant 0 : index
    %183 = vector.load %arg6[%c3, %c0_66, %c0_67] : memref<25x4x1xf32, #tpu.memory_space<vmem>>, vector<1x4x1xf32>
    %184 = vector.shape_cast %183 : vector<1x4x1xf32> to vector<4x1xf32>
    %185 = vector.broadcast %184 : vector<4x1xf32> to vector<4x128xf32>
    %186 = arith.mulf %182, %185 : vector<4x128xf32>
    %187 = arith.addf %170, %186 : vector<4x128xf32>
    %188 = vector.extract_strided_slice %5 {offsets = [0, 19], sizes = [4, 128], strides = [1, 1]} : vector<4x196xf32> to vector<4x128xf32>
    %cst_68 = arith.constant 0.000000e+00 : f32
    %189 = vector.broadcast %cst_68 : f32 to vector<4x128xf32>
    %190 = arith.select %179, %188, %189 : vector<4x128xi1>, vector<4x128xf32>
    %c8 = arith.constant 8 : index
    %c0_69 = arith.constant 0 : index
    %c0_70 = arith.constant 0 : index
    %191 = vector.load %arg6[%c8, %c0_69, %c0_70] : memref<25x4x1xf32, #tpu.memory_space<vmem>>, vector<1x4x1xf32>
    %192 = vector.shape_cast %191 : vector<1x4x1xf32> to vector<4x1xf32>
    %193 = vector.broadcast %192 : vector<4x1xf32> to vector<4x128xf32>
    %194 = arith.mulf %190, %193 : vector<4x128xf32>
    %195 = arith.addf %187, %194 : vector<4x128xf32>
    %196 = vector.extract_strided_slice %5 {offsets = [0, 35], sizes = [4, 128], strides = [1, 1]} : vector<4x196xf32> to vector<4x128xf32>
    %cst_71 = arith.constant 0.000000e+00 : f32
    %197 = vector.broadcast %cst_71 : f32 to vector<4x128xf32>
    %198 = arith.select %179, %196, %197 : vector<4x128xi1>, vector<4x128xf32>
    %c13 = arith.constant 13 : index
    %c0_72 = arith.constant 0 : index
    %c0_73 = arith.constant 0 : index
    %199 = vector.load %arg6[%c13, %c0_72, %c0_73] : memref<25x4x1xf32, #tpu.memory_space<vmem>>, vector<1x4x1xf32>
    %200 = vector.shape_cast %199 : vector<1x4x1xf32> to vector<4x1xf32>
    %201 = vector.broadcast %200 : vector<4x1xf32> to vector<4x128xf32>
    %202 = arith.mulf %198, %201 : vector<4x128xf32>
    %203 = arith.addf %195, %202 : vector<4x128xf32>
    %204 = vector.extract_strided_slice %5 {offsets = [0, 51], sizes = [4, 128], strides = [1, 1]} : vector<4x196xf32> to vector<4x128xf32>
    %cst_74 = arith.constant 0.000000e+00 : f32
    %205 = vector.broadcast %cst_74 : f32 to vector<4x128xf32>
    %206 = arith.select %179, %204, %205 : vector<4x128xi1>, vector<4x128xf32>
    %c18 = arith.constant 18 : index
    %c0_75 = arith.constant 0 : index
    %c0_76 = arith.constant 0 : index
    %207 = vector.load %arg6[%c18, %c0_75, %c0_76] : memref<25x4x1xf32, #tpu.memory_space<vmem>>, vector<1x4x1xf32>
    %208 = vector.shape_cast %207 : vector<1x4x1xf32> to vector<4x1xf32>
    %209 = vector.broadcast %208 : vector<4x1xf32> to vector<4x128xf32>
    %210 = arith.mulf %206, %209 : vector<4x128xf32>
    %211 = arith.addf %203, %210 : vector<4x128xf32>
    %212 = vector.extract_strided_slice %5 {offsets = [0, 67], sizes = [4, 128], strides = [1, 1]} : vector<4x196xf32> to vector<4x128xf32>
    %cst_77 = arith.constant 0.000000e+00 : f32
    %213 = vector.broadcast %cst_77 : f32 to vector<4x128xf32>
    %214 = arith.select %179, %212, %213 : vector<4x128xi1>, vector<4x128xf32>
    %c23 = arith.constant 23 : index
    %c0_78 = arith.constant 0 : index
    %c0_79 = arith.constant 0 : index
    %215 = vector.load %arg6[%c23, %c0_78, %c0_79] : memref<25x4x1xf32, #tpu.memory_space<vmem>>, vector<1x4x1xf32>
    %216 = vector.shape_cast %215 : vector<1x4x1xf32> to vector<4x1xf32>
    %217 = vector.broadcast %216 : vector<4x1xf32> to vector<4x128xf32>
    %218 = arith.mulf %214, %217 : vector<4x128xf32>
    %219 = arith.addf %211, %218 : vector<4x128xf32>
    %c4_i32 = arith.constant 4 : i32
    %220 = vector.broadcast %c4_i32 : i32 to vector<4x128xi32>
    %221 = arith.addi %22, %220 : vector<4x128xi32>
    %c2_i32_80 = arith.constant 2 : i32
    %222 = vector.broadcast %c2_i32_80 : i32 to vector<4x128xi32>
    %223 = arith.cmpi sge, %221, %222 : vector<4x128xi32>
    %c4_i32_81 = arith.constant 4 : i32
    %224 = vector.broadcast %c4_i32_81 : i32 to vector<4x128xi32>
    %225 = arith.addi %22, %224 : vector<4x128xi32>
    %c18_i32_82 = arith.constant 18 : i32
    %226 = vector.broadcast %c18_i32_82 : i32 to vector<4x128xi32>
    %227 = arith.cmpi slt, %225, %226 : vector<4x128xi32>
    %228 = arith.andi %223, %227 : vector<4x128xi1>
    %229 = vector.extract_strided_slice %5 {offsets = [0, 4], sizes = [4, 128], strides = [1, 1]} : vector<4x196xf32> to vector<4x128xf32>
    %cst_83 = arith.constant 0.000000e+00 : f32
    %230 = vector.broadcast %cst_83 : f32 to vector<4x128xf32>
    %231 = arith.select %228, %229, %230 : vector<4x128xi1>, vector<4x128xf32>
    %c4 = arith.constant 4 : index
    %c0_84 = arith.constant 0 : index
    %c0_85 = arith.constant 0 : index
    %232 = vector.load %arg6[%c4, %c0_84, %c0_85] : memref<25x4x1xf32, #tpu.memory_space<vmem>>, vector<1x4x1xf32>
    %233 = vector.shape_cast %232 : vector<1x4x1xf32> to vector<4x1xf32>
    %234 = vector.broadcast %233 : vector<4x1xf32> to vector<4x128xf32>
    %235 = arith.mulf %231, %234 : vector<4x128xf32>
    %236 = arith.addf %219, %235 : vector<4x128xf32>
    %237 = vector.extract_strided_slice %5 {offsets = [0, 20], sizes = [4, 128], strides = [1, 1]} : vector<4x196xf32> to vector<4x128xf32>
    %cst_86 = arith.constant 0.000000e+00 : f32
    %238 = vector.broadcast %cst_86 : f32 to vector<4x128xf32>
    %239 = arith.select %228, %237, %238 : vector<4x128xi1>, vector<4x128xf32>
    %c9 = arith.constant 9 : index
    %c0_87 = arith.constant 0 : index
    %c0_88 = arith.constant 0 : index
    %240 = vector.load %arg6[%c9, %c0_87, %c0_88] : memref<25x4x1xf32, #tpu.memory_space<vmem>>, vector<1x4x1xf32>
    %241 = vector.shape_cast %240 : vector<1x4x1xf32> to vector<4x1xf32>
    %242 = vector.broadcast %241 : vector<4x1xf32> to vector<4x128xf32>
    %243 = arith.mulf %239, %242 : vector<4x128xf32>
    %244 = arith.addf %236, %243 : vector<4x128xf32>
    %245 = vector.extract_strided_slice %5 {offsets = [0, 36], sizes = [4, 128], strides = [1, 1]} : vector<4x196xf32> to vector<4x128xf32>
    %cst_89 = arith.constant 0.000000e+00 : f32
    %246 = vector.broadcast %cst_89 : f32 to vector<4x128xf32>
    %247 = arith.select %228, %245, %246 : vector<4x128xi1>, vector<4x128xf32>
    %c14 = arith.constant 14 : index
    %c0_90 = arith.constant 0 : index
    %c0_91 = arith.constant 0 : index
    %248 = vector.load %arg6[%c14, %c0_90, %c0_91] : memref<25x4x1xf32, #tpu.memory_space<vmem>>, vector<1x4x1xf32>
    %249 = vector.shape_cast %248 : vector<1x4x1xf32> to vector<4x1xf32>
    %250 = vector.broadcast %249 : vector<4x1xf32> to vector<4x128xf32>
    %251 = arith.mulf %247, %250 : vector<4x128xf32>
    %252 = arith.addf %244, %251 : vector<4x128xf32>
    %253 = vector.extract_strided_slice %5 {offsets = [0, 52], sizes = [4, 128], strides = [1, 1]} : vector<4x196xf32> to vector<4x128xf32>
    %cst_92 = arith.constant 0.000000e+00 : f32
    %254 = vector.broadcast %cst_92 : f32 to vector<4x128xf32>
    %255 = arith.select %228, %253, %254 : vector<4x128xi1>, vector<4x128xf32>
    %c19 = arith.constant 19 : index
    %c0_93 = arith.constant 0 : index
    %c0_94 = arith.constant 0 : index
    %256 = vector.load %arg6[%c19, %c0_93, %c0_94] : memref<25x4x1xf32, #tpu.memory_space<vmem>>, vector<1x4x1xf32>
    %257 = vector.shape_cast %256 : vector<1x4x1xf32> to vector<4x1xf32>
    %258 = vector.broadcast %257 : vector<4x1xf32> to vector<4x128xf32>
    %259 = arith.mulf %255, %258 : vector<4x128xf32>
    %260 = arith.addf %252, %259 : vector<4x128xf32>
    %261 = vector.extract_strided_slice %5 {offsets = [0, 68], sizes = [4, 128], strides = [1, 1]} : vector<4x196xf32> to vector<4x128xf32>
    %cst_95 = arith.constant 0.000000e+00 : f32
    %262 = vector.broadcast %cst_95 : f32 to vector<4x128xf32>
    %263 = arith.select %228, %261, %262 : vector<4x128xi1>, vector<4x128xf32>
    %c24 = arith.constant 24 : index
    %c0_96 = arith.constant 0 : index
    %c0_97 = arith.constant 0 : index
    %264 = vector.load %arg6[%c24, %c0_96, %c0_97] : memref<25x4x1xf32, #tpu.memory_space<vmem>>, vector<1x4x1xf32>
    %265 = vector.shape_cast %264 : vector<1x4x1xf32> to vector<4x1xf32>
    %266 = vector.broadcast %265 : vector<4x1xf32> to vector<4x128xf32>
    %267 = arith.mulf %263, %266 : vector<4x128xf32>
    %268 = arith.addf %260, %267 : vector<4x128xf32>
    %c0_98 = arith.constant 0 : index
    %c0_99 = arith.constant 0 : index
    %269 = vector.load %arg7[%c0_98, %c0_99] : memref<4x1xf32, #tpu.memory_space<vmem>>, vector<4x1xf32>
    %270 = vector.broadcast %269 : vector<4x1xf32> to vector<4x128xf32>
    %271 = arith.mulf %268, %270 : vector<4x128xf32>
    %c0_100 = arith.constant 0 : index
    %c0_101 = arith.constant 0 : index
    %272 = vector.load %arg8[%c0_100, %c0_101] : memref<4x1xf32, #tpu.memory_space<vmem>>, vector<4x1xf32>
    %273 = vector.broadcast %272 : vector<4x1xf32> to vector<4x128xf32>
    %274 = arith.addf %271, %273 : vector<4x128xf32>
    %275 = arith.negf %274 : vector<4x128xf32>
    %276 = math.exp %275 : vector<4x128xf32>
    %cst_102 = arith.constant 1.000000e+00 : f32
    %277 = vector.broadcast %cst_102 : f32 to vector<4x128xf32>
    %278 = arith.addf %277, %276 : vector<4x128xf32>
    %279 = arith.divf %277, %278 : vector<4x128xf32>
    %280 = arith.mulf %274, %279 : vector<4x128xf32>
    %281 = vector.extract_strided_slice %5 {offsets = [0, 34], sizes = [4, 128], strides = [1, 1]} : vector<4x196xf32> to vector<4x128xf32>
    %282 = tpu.concatenate %281, %280 in 0 : vector<4x128xf32>, vector<4x128xf32> -> vector<8x128xf32>
    %c0_103 = arith.constant 0 : index
    %c0_104 = arith.constant 0 : index
    %c0_105 = arith.constant 0 : index
    %283 = vector.load %arg9[%c0_103, %c0_104, %c0_105] : memref<1x8x128xf32, #tpu.memory_space<vmem>>, vector<1x8x128xf32>
    %284 = vector.shape_cast %283 : vector<1x8x128xf32> to vector<8x128xf32>
    %285 = vector.shape_cast %282 : vector<8x128xf32> to vector<1x8x128xf32>
    tpu.vector_store %arg9[%c0_103, %c0_104, %c0_105], %285 {strides = array<i32>} : memref<1x8x128xf32, #tpu.memory_space<vmem>>, vector<1x8x128xf32>,
    return
  }
  func.func @transform_0(%arg0: i32, %arg1: i32) -> (i32, i32, i32) {
    %c0_i32 = arith.constant 0 : i32
    %c0_i32_0 = arith.constant 0 : i32
    %c0_i32_1 = arith.constant 0 : i32
    return %arg0, %c0_i32, %c0_i32_0 : i32, i32, i32
  }
  func.func @transform_1(%arg0: i32, %arg1: i32) -> (i32, i32) {
    %c0_i32 = arith.constant 0 : i32
    %c0_i32_0 = arith.constant 0 : i32
    %c0_i32_1 = arith.constant 0 : i32
    return %c0_i32, %c0_i32_0 : i32, i32
  }
  func.func @transform_2(%arg0: i32, %arg1: i32) -> (i32, i32) {
    %c0_i32 = arith.constant 0 : i32
    %c0_i32_0 = arith.constant 0 : i32
    %c0_i32_1 = arith.constant 0 : i32
    return %c0_i32, %c0_i32_0 : i32, i32
  }
  func.func @transform_3(%arg0: i32, %arg1: i32) -> (i32, i32) {
    %c0_i32 = arith.constant 0 : i32
    %c0_i32_0 = arith.constant 0 : i32
    %c0_i32_1 = arith.constant 0 : i32
    return %c0_i32, %c0_i32_0 : i32, i32
  }
  func.func @transform_4(%arg0: i32, %arg1: i32) -> (i32, i32, i32) {
    %c0_i32 = arith.constant 0 : i32
    %c0_i32_0 = arith.constant 0 : i32
    %c0_i32_1 = arith.constant 0 : i32
    %c0_i32_2 = arith.constant 0 : i32
    return %c0_i32, %c0_i32_0, %c0_i32_1 : i32, i32, i32
  }
  func.func @transform_5(%arg0: i32, %arg1: i32) -> (i32, i32) {
    %c0_i32 = arith.constant 0 : i32
    %c0_i32_0 = arith.constant 0 : i32
    %c0_i32_1 = arith.constant 0 : i32
    return %c0_i32, %c0_i32_0 : i32, i32
  }
  func.func @transform_6(%arg0: i32, %arg1: i32) -> (i32, i32) {
    %c0_i32 = arith.constant 0 : i32
    %c0_i32_0 = arith.constant 0 : i32
    %c0_i32_1 = arith.constant 0 : i32
    return %c0_i32, %c0_i32_0 : i32, i32
  }
  func.func @transform_7(%arg0: i32, %arg1: i32) -> (i32, i32, i32) {
    %c0_i32 = arith.constant 0 : i32
    %c0_i32_0 = arith.constant 0 : i32
    return %arg0, %c0_i32, %arg1 : i32, i32, i32
  }
}

</mosaic_0001>

<llo_original>
// kernel: ghost_conv_forward.1
$region0: #{ghost_conv_forward.1}
  #allocation0 [shape = 'u32[]', space=smem, size = 0x4, offset = 0x4, fixed_abs, tag = 'smem constant byte address 0x4 - core index']
  #allocation1 [shape = 'u32[72,128]{1,0:T(1,128)}', space=vmem, size = 0x9000, scoped, tag = 'internal scratch']
  #allocation2 [shape = 'f32[2,4,196]{2,1,0:T(4,128)}', space=vmem, size = 0x2000, scoped, tag = 'scratch operand']
  %s0 = inlined_call_operand.vmem [shape: f32[2,4,256], index: 0, kind: input, shape index: {}]
  %s1 = inlined_call_operand.vmem [shape: f32[4,4], index: 1, kind: input, shape index: {}]
  %s2 = inlined_call_operand.vmem [shape: f32[4,1], index: 2, kind: input, shape index: {}]
  %s3 = inlined_call_operand.vmem [shape: f32[4,1], index: 3, kind: input, shape index: {}]
  %s4 = inlined_call_operand.vmem [shape: f32[25,4,1], index: 4, kind: input, shape index: {}]
  %s5 = inlined_call_operand.vmem [shape: f32[4,1], index: 5, kind: input, shape index: {}]
  %s6 = inlined_call_operand.vmem [shape: f32[4,1], index: 6, kind: input, shape index: {}]
  %s7 = inlined_call_operand.vmem [shape: f32[2,8,256], index: 7, kind: output, shape index: {}]
  %s8 = sld [smem:[#allocation0]]
  $region65: #{ghost_conv_forward.1} parent=0
    _
  %s10 = ssub.s32 1, %s8
  %s11 = scalar_select 0, %s10, %s8
  loop: start=0, step=1, limit=6
  $region2: #{ghost_conv_forward.1} parent=0 // loop_pre_header
    _
  $region3: #{ghost_conv_forward.1} parent=0 // loop_header
    %s13 = sphi 0, %s17
    %p14 = scmp.ge.s32.totalorder %s13, 6
    %s20 = sphi 0, %s32
    %s21 = sphi 0, %s28
    %s22 = sphi 0, %s20
    %s23 = sphi 0, %s21
    %s24 = sphi 0, %s22
    %s25 = sphi 0, %s23
    %s35 = sphi 0, %s37
    %s38 = sphi 0, %s35
    %s39 = sphi 0, %s38
    %s55 = sphi 0, %s39
    %s59 = sphi 0, %s59
    %s61 = sphi 0, %s59
    %s62 = sphi 0, %s61
    %s76 = sphi 0, %s62
    %s80 = sphi 0, %s80
    %s82 = sphi 0, %s80
    %s83 = sphi 0, %s82
    %s97 = sphi 0, %s83
    %s101 = sphi 0, %s101
    %s103 = sphi 0, %s101
    %s104 = sphi 0, %s103
    %s118 = sphi 0, %s104
    %s122 = sphi 0, %s122
    %s124 = sphi 0, %s122
    %s125 = sphi 0, %s124
    %s139 = sphi 0, %s125
    %s143 = sphi 0, %s143
    %s145 = sphi 0, %s143
    %s146 = sphi 0, %s145
    %s160 = sphi 0, %s146
    %s164 = sphi 0, %s164
    %s166 = sphi 0, %s164
    %s167 = sphi 0, %s166
    %s181 = sphi 0, %s167
    %s189 = sphi 0, %s191
    %s192 = sphi 0, %s189
    %s193 = sphi 0, %s192
    %s209 = sphi 0, %s193
  $region4: #{ghost_conv_forward.1} parent=0 // loop_header_branch
    %16 = sbr.rel (%p14) target = $region8
  $region5: #{ghost_conv_forward.1} parent=0 // loop_body
    %s18 = ssub.s32 %s13, 1
    %s19 = ssub.s32 %s13, 2
    %s26 = sadd.s32 1, %s21
    %p27 = scmp.ge.s32.totalorder %s26, 2
    %s28 = scalar_select %p27, 0, %s26
    %s29 = sadd.s32 1, %s20
    %s30 = scalar_select %p27, %s29, %s20
    %p31 = scmp.ge.s32.totalorder %s30, 2
    %s32 = scalar_select %p31, 0, %s30
    %s33 = ssub.s32 %s20, %s32
    %p34 = scmp.eq.s32.totalorder %s33, 0
    %s36 = sadd.s32 %s35, 1
    %s37 = scalar_select %p34, %s35, %s36
    %p40 = pneg %p34
    %p41 = scmp.eq.s32.totalorder %s13, 3
    %p42 = por %p40, %p41
    %p43 = scmp.ne.s32.totalorder %s35, %s38
    %p44 = scmp.eq.s32.totalorder %s13, 0
    %p45 = por %p43, %p44
    %p46 = scmp.ne.s32.totalorder %s35, %s38
    %p47 = scmp.eq.s32.totalorder %s18, 3
    %p48 = por %p46, %p47
    %p49 = scmp.ne.s32.totalorder %s38, %s39
    %p50 = scmp.eq.s32.totalorder %s18, 0
    %p51 = por %p49, %p50
    %p52 = scmp.ne.s32.totalorder %s38, %s39
    %p53 = scmp.eq.s32.totalorder %s19, 3
    %p54 = por %p52, %p53
    %p56 = scmp.ne.s32.totalorder %s39, %s55
    %p57 = scmp.eq.s32.totalorder %s19, 0
    %p58 = por %p56, %p57
    %s60 = sadd.s32 %s59, 1
    %p63 = scmp.eq.s32.totalorder %s13, 3
    %p64 = scmp.ne.s32.totalorder %s59, %s61
    %p65 = scmp.eq.s32.totalorder %s13, 0
    %p66 = por %p64, %p65
    %p67 = scmp.ne.s32.totalorder %s59, %s61
    %p68 = scmp.eq.s32.totalorder %s18, 3
    %p69 = por %p67, %p68
    %p70 = scmp.ne.s32.totalorder %s61, %s62
    %p71 = scmp.eq.s32.totalorder %s18, 0
    %p72 = por %p70, %p71
    %p73 = scmp.ne.s32.totalorder %s61, %s62
    %p74 = scmp.eq.s32.totalorder %s19, 3
    %p75 = por %p73, %p74
    %p77 = scmp.ne.s32.totalorder %s62, %s76
    %p78 = scmp.eq.s32.totalorder %s19, 0
    %p79 = por %p77, %p78
    %s81 = sadd.s32 %s80, 1
    %p84 = scmp.eq.s32.totalorder %s13, 3
    %p85 = scmp.ne.s32.totalorder %s80, %s82
    %p86 = scmp.eq.s32.totalorder %s13, 0
    %p87 = por %p85, %p86
    %p88 = scmp.ne.s32.totalorder %s80, %s82
    %p89 = scmp.eq.s32.totalorder %s18, 3
    %p90 = por %p88, %p89
    %p91 = scmp.ne.s32.totalorder %s82, %s83
    %p92 = scmp.eq.s32.totalorder %s18, 0
    %p93 = por %p91, %p92
    %p94 = scmp.ne.s32.totalorder %s82, %s83
    %p95 = scmp.eq.s32.totalorder %s19, 3
    %p96 = por %p94, %p95
    %p98 = scmp.ne.s32.totalorder %s83, %s97
    %p99 = scmp.eq.s32.totalorder %s19, 0
    %p100 = por %p98, %p99
    %s102 = sadd.s32 %s101, 1
    %p105 = scmp.eq.s32.totalorder %s13, 3
    %p106 = scmp.ne.s32.totalorder %s101, %s103
    %p107 = scmp.eq.s32.totalorder %s13, 0
    %p108 = por %p106, %p107
    %p109 = scmp.ne.s32.totalorder %s101, %s103
    %p110 = scmp.eq.s32.totalorder %s18, 3
    %p111 = por %p109, %p110
    %p112 = scmp.ne.s32.totalorder %s103, %s104
    %p113 = scmp.eq.s32.totalorder %s18, 0
    %p114 = por %p112, %p113
    %p115 = scmp.ne.s32.totalorder %s103, %s104
    %p116 = scmp.eq.s32.totalorder %s19, 3
    %p117 = por %p115, %p116
    %p119 = scmp.ne.s32.totalorder %s104, %s118
    %p120 = scmp.eq.s32.totalorder %s19, 0
    %p121 = por %p119, %p120
    %s123 = sadd.s32 %s122, 1
    %p126 = scmp.eq.s32.totalorder %s13, 3
    %p127 = scmp.ne.s32.totalorder %s122, %s124
    %p128 = scmp.eq.s32.totalorder %s13, 0
    %p129 = por %p127, %p128
    %p130 = scmp.ne.s32.totalorder %s122, %s124
    %p131 = scmp.eq.s32.totalorder %s18, 3
    %p132 = por %p130, %p131
    %p133 = scmp.ne.s32.totalorder %s124, %s125
    %p134 = scmp.eq.s32.totalorder %s18, 0
    %p135 = por %p133, %p134
    %p136 = scmp.ne.s32.totalorder %s124, %s125
    %p137 = scmp.eq.s32.totalorder %s19, 3
    %p138 = por %p136, %p137
    %p140 = scmp.ne.s32.totalorder %s125, %s139
    %p141 = scmp.eq.s32.totalorder %s19, 0
    %p142 = por %p140, %p141
    %s144 = sadd.s32 %s143, 1
    %p147 = scmp.eq.s32.totalorder %s13, 3
    %p148 = scmp.ne.s32.totalorder %s143, %s145
    %p149 = scmp.eq.s32.totalorder %s13, 0
    %p150 = por %p148, %p149
    %p151 = scmp.ne.s32.totalorder %s143, %s145
    %p152 = scmp.eq.s32.totalorder %s18, 3
    %p153 = por %p151, %p152
    %p154 = scmp.ne.s32.totalorder %s145, %s146
    %p155 = scmp.eq.s32.totalorder %s18, 0
    %p156 = por %p154, %p155
    %p157 = scmp.ne.s32.totalorder %s145, %s146
    %p158 = scmp.eq.s32.totalorder %s19, 3
    %p159 = por %p157, %p158
    %p161 = scmp.ne.s32.totalorder %s146, %s160
    %p162 = scmp.eq.s32.totalorder %s19, 0
    %p163 = por %p161, %p162
    %s165 = sadd.s32 %s164, 1
    %p168 = scmp.eq.s32.totalorder %s13, 3
    %p169 = scmp.ne.s32.totalorder %s164, %s166
    %p170 = scmp.eq.s32.totalorder %s13, 0
    %p171 = por %p169, %p170
    %p172 = scmp.ne.s32.totalorder %s164, %s166
    %p173 = scmp.eq.s32.totalorder %s18, 3
    %p174 = por %p172, %p173
    %p175 = scmp.ne.s32.totalorder %s166, %s167
    %p176 = scmp.eq.s32.totalorder %s18, 0
    %p177 = por %p175, %p176
    %p178 = scmp.ne.s32.totalorder %s166, %s167
    %p179 = scmp.eq.s32.totalorder %s19, 3
    %p180 = por %p178, %p179
    %p182 = scmp.ne.s32.totalorder %s167, %s181
    %p183 = scmp.eq.s32.totalorder %s19, 0
    %p184 = por %p182, %p183
    %s185 = ssub.s32 %s20, %s32
    %s186 = ssub.s32 %s21, %s28
    %s187 = sor.u32 %s185, %s186
    %p188 = scmp.eq.s32.totalorder %s187, 0
    %s190 = sadd.s32 %s189, 1
    %s191 = scalar_select %p188, %s189, %s190
    %p194 = pneg %p188
    %p195 = scmp.eq.s32.totalorder %s13, 3
    %p196 = por %p194, %p195
    %p197 = scmp.ne.s32.totalorder %s189, %s192
    %p198 = scmp.eq.s32.totalorder %s13, 0
    %p199 = por %p197, %p198
    %p200 = scmp.ne.s32.totalorder %s189, %s192
    %p201 = scmp.eq.s32.totalorder %s18, 3
    %p202 = por %p200, %p201
    %p203 = scmp.ne.s32.totalorder %s192, %s193
    %p204 = scmp.eq.s32.totalorder %s18, 0
    %p205 = por %p203, %p204
    %p206 = scmp.ne.s32.totalorder %s192, %s193
    %p207 = scmp.eq.s32.totalorder %s19, 3
    %p208 = por %p206, %p207
    %p210 = scmp.ne.s32.totalorder %s193, %s209
    %p211 = scmp.eq.s32.totalorder %s19, 0
    %p212 = por %p210, %p211
    %p213 = scmp.le.s32.totalorder 1, %s13
    %p214 = scmp.lt.s32.totalorder %s13, 5
    %p215 = pnand %p213, %p214
    %p216 = pneg %p215
    // Predicated region
    $region9: #{ghost_conv_forward.1} parent=5 // pred_check
      _
    $region10: #{ghost_conv_forward.1} parent=5 // pred_check_branch
      %218 = sbr.rel (%p215) target = $region12
    $region11: #{ghost_conv_forward.1} parent=5 // pred_region
      %s219 = ssub.s32 %s13, 1
      // Predicated region
      $region13: #{ghost_conv_forward.1} parent=11 // pred_check
        %p220 = pneg %p72
      $region14: #{ghost_conv_forward.1} parent=11 // pred_check_branch
        %222 = sbr.rel (%p220) target = $region16
      $region15: #{ghost_conv_forward.1} parent=11 // pred_region
        _
      $region16: #{ghost_conv_forward.1} parent=11 // pred_fallthru
        _
      // Predicated region
      $region17: #{ghost_conv_forward.1} parent=11 // pred_check
        %p223 = pneg %p93
      $region18: #{ghost_conv_forward.1} parent=11 // pred_check_branch
        %225 = sbr.rel (%p223) target = $region20
      $region19: #{ghost_conv_forward.1} parent=11 // pred_region
        _
      $region20: #{ghost_conv_forward.1} parent=11 // pred_fallthru
        _
      // Predicated region
      $region21: #{ghost_conv_forward.1} parent=11 // pred_check
        %p226 = pneg %p114
      $region22: #{ghost_conv_forward.1} parent=11 // pred_check_branch
        %228 = sbr.rel (%p226) target = $region24
      $region23: #{ghost_conv_forward.1} parent=11 // pred_region
        _
      $region24: #{ghost_conv_forward.1} parent=11 // pred_fallthru
        _
      // Predicated region
      $region25: #{ghost_conv_forward.1} parent=11 // pred_check
        %p229 = pneg %p135
      $region26: #{ghost_conv_forward.1} parent=11 // pred_check_branch
        %231 = sbr.rel (%p229) target = $region28
      $region27: #{ghost_conv_forward.1} parent=11 // pred_region
        _
      $region28: #{ghost_conv_forward.1} parent=11 // pred_fallthru
        _
      // Predicated region
      $region29: #{ghost_conv_forward.1} parent=11 // pred_check
        %p232 = pneg %p156
      $region30: #{ghost_conv_forward.1} parent=11 // pred_check_branch
        %234 = sbr.rel (%p232) target = $region32
      $region31: #{ghost_conv_forward.1} parent=11 // pred_region
        _
      $region32: #{ghost_conv_forward.1} parent=11 // pred_fallthru
        _
      // Predicated region
      $region33: #{ghost_conv_forward.1} parent=11 // pred_check
        %p235 = pneg %p177
      $region34: #{ghost_conv_forward.1} parent=11 // pred_check_branch
        %237 = sbr.rel (%p235) target = $region36
      $region35: #{ghost_conv_forward.1} parent=11 // pred_region
        _
      $region36: #{ghost_conv_forward.1} parent=11 // pred_fallthru
        _
    $region12: #{ghost_conv_forward.1} parent=5 // pred_fallthru
      _
    %p238 = scmp.lt.s32.totalorder %s13, 4
    // Predicated region
    $region37: #{ghost_conv_forward.1} parent=5 // pred_check
      %p239 = pneg %p238
    $region38: #{ghost_conv_forward.1} parent=5 // pred_check_branch
      %241 = sbr.rel (%p239) target = $region40
    $region39: #{ghost_conv_forward.1} parent=5 // pred_region
      // Predicated region
      $region41: #{ghost_conv_forward.1} parent=39 // pred_check
        %p242 = pneg %p45
      $region42: #{ghost_conv_forward.1} parent=39 // pred_check_branch
        %244 = sbr.rel (%p242) target = $region44
      $region43: #{ghost_conv_forward.1} parent=39 // pred_region
        %p245 = scmp.lt.s32.totalorder %s20, 1
        %s246 = scalar_select %p245, %s20, 1
        %s247 = smul.addr %s246, 2
        %s248 = smul.addr %s247, 4
        %s249 = scalar_lea.vmem %s0, %s248
      $region44: #{ghost_conv_forward.1} parent=39 // pred_fallthru
        _
    $region40: #{ghost_conv_forward.1} parent=5 // pred_fallthru
      _
    %p250 = scmp.le.s32.totalorder 1, %s13
    %p251 = scmp.lt.s32.totalorder %s13, 5
    %p252 = pnand %p250, %p251
    %p253 = pneg %p252
    // Predicated region
    $region45: #{ghost_conv_forward.1} parent=5 // pred_check
      _
    $region46: #{ghost_conv_forward.1} parent=5 // pred_check_branch
      %255 = sbr.rel (%p252) target = $region48
    $region47: #{ghost_conv_forward.1} parent=5 // pred_region
      %s256 = ssub.s32 %s13, 1
      %p257 = scmp.lt.s32.totalorder %s22, 1
      %s258 = scalar_select %p257, %s22, 1
      %s259 = smul.addr %s258, 2
      %s260 = smul.addr %s259, 4
      %s261 = scalar_lea.vmem %s0, %s260
      %p262 = pneg %p51
      %p263 = pneg %p48
      %p264 = pneg %p72
      %p265 = pneg %p69
      %p266 = pneg %p93
      %p267 = pneg %p90
      %p268 = pneg %p114
      %p269 = pneg %p111
      %p270 = pneg %p135
      %p271 = pneg %p132
      %p272 = pneg %p156
      %p273 = pneg %p153
      %p274 = pneg %p177
      %p275 = pneg %p174
      %p276 = pneg %p205
      %p277 = pneg %p202
      %p278 = scmp.lt.s32.totalorder %s22, 1
      %s279 = scalar_select %p278, %s22, 1
      %p280 = scmp.lt.s32.totalorder %s23, 1
      %s281 = scalar_select %p280, %s23, 1
      %s282 = smul.addr %s279, 2
      %s283 = sadd.s32 %s281, %s282
      %s284 = smul.addr %s283, 8
      %s285 = scalar_lea.vmem %s7, %s284
      %p286 = scmp.lt.s32.totalorder %s22, 1
      %s287 = scalar_select %p286, %s22, 1
      %s288 = smul.addr %s287, 2
      %s289 = smul.addr %s288, 4
      %s290 = scalar_lea.vmem %s0, %s289
      %p291 = scmp.lt.s32.totalorder %s22, 1
      %s292 = scalar_select %p291, %s22, 1
      %p293 = scmp.lt.s32.totalorder %s23, 1
      %s294 = scalar_select %p293, %s23, 1
      %s295 = smul.addr %s292, 2
      %s296 = sadd.s32 %s294, %s295
      %s297 = smul.addr %s296, 8
      %s298 = scalar_lea.vmem %s7, %s297
      %p299 = scmp.eq.s32.totalorder %s23, 0
      // Predicated region
      $region49: #{ghost_conv_forward.1} parent=47 // pred_check
        %p300 = pneg %p299
      $region50: #{ghost_conv_forward.1} parent=47 // pred_check_branch
        %302 = sbr.rel (%p300) target = $region52
      $region51: #{ghost_conv_forward.1} parent=47 // pred_region
        %v303 = vld [vmem:[%s1] sm:$0xf]
        %v304 = vld [vmem:[%s290] sm:$0xff]
        %306 = vst [vmem:[#allocation1] ss:$2 sm:$0xff] %v304
        %v307 = vld.sshfl [vmem:[#allocation1] sm:$0xff pattern:$0x75316420]
        %v308 = vld.sshfl [vmem:[#allocation1 + $0x8] sm:$0xff pattern:$0x75316420]
        %vm309 = vcmask 31744
        %v311 = vsel %vm309, %v303, 0
        %vm313 = vcmask 1043456
        %v314 = vsel %vm313, %v307, 0
        %v316 = vsel %vm313, %v308, 0
        %318 = vmatpush.msra.mxu0 0.0
        %319 = vmatpush.msra.mxu0 0.0
        %320 = vmatpush.msra.mxu0 0.0
        %321 = vmatpush.msra.mxu0 0.0
        %322 = vmatpush.msra.mxu0 0.0
        %323 = vmatpush.msra.mxu0 0.0
        %324 = vmatpush.msra.mxu0 0.0
        %325 = vmatpush.msra.mxu0 0.0
        %326 = vmatpush.msra.mxu0 0.0
        %327 = vmatpush.msra.mxu0 0.0
        %328 = vmatpush.msra.mxu0 0.0
        %329 = vmatpush.msra.mxu0 0.0
        %330 = vmatpush.msra.mxu0 0.0
        %331 = vmatpush.msra.mxu0 0.0
        %332 = vmatpush.msra.mxu0 0.0
        %333 = vmatpush.msra.mxu0 %v314
        %334 = vmatmul.f32.gmra.mxu0 %v311
        %v335 = vpop.f32.mrf.mxu0
        %v336 = vadd.f32 0.0, %v335
        %337 = vdwg.mxu0
        %338 = vmatpush.msra.mxu0 0.0
        %339 = vmatpush.msra.mxu0 0.0
        %340 = vmatpush.msra.mxu0 0.0
        %341 = vmatpush.msra.mxu0 0.0
        %342 = vmatpush.msra.mxu0 0.0
        %343 = vmatpush.msra.mxu0 0.0
        %344 = vmatpush.msra.mxu0 0.0
        %345 = vmatpush.msra.mxu0 0.0
        %346 = vmatpush.msra.mxu0 0.0
        %347 = vmatpush.msra.mxu0 0.0
        %348 = vmatpush.msra.mxu0 0.0
        %349 = vmatpush.msra.mxu0 0.0
        %350 = vmatpush.msra.mxu0 0.0
        %351 = vmatpush.msra.mxu0 0.0
        %352 = vmatpush.msra.mxu0 0.0
        %353 = vmatpush.msra.mxu0 %v316
        %354 = vmatmul.f32.gmra.mxu0 %v311
        %v355 = vpop.f32.mrf.mxu0
        %v356 = vadd.f32 0.0, %v355
        %357 = vdwg.mxu0
        %v358 = vld [vmem:[%s2] sm:$0xf]
        %360 = vset.pattern.permute.xlu0 0
        %361 = vperm.xlu0 %360, %v358
        %v362 = vpop.permute.xlu0 %361
        %v364 = vmul.f32 %v336, %v362
        %v365 = vmul.f32 %v356, %v362
        %v366 = vld [vmem:[%s3] sm:$0xf]
        %368 = vset.pattern.permute.xlu0 0
        %369 = vperm.xlu0 %368, %v366
        %v370 = vpop.permute.xlu0 %369
        %v372 = vadd.f32 %v364, %v370
        %v373 = vadd.f32 %v365, %v370
        %v374 = vxor.u32 %v372, 2147483648
        %v375 = vxor.u32 %v373, 2147483648
        %v376 = vmul.f32 %v374, 1.442695
        %v377 = vpow.pop %v376
        %v378 = vmul.f32 %v375, 1.442695
        %v379 = vpow.pop %v378
        %v380 = vadd.f32 %v377, 1.0
        %v381 = vadd.f32 %v379, 1.0
        %v382 = vrcp.pop %v380
        %v383 = vmul.f32 %v380, %v382
        %v384 = vsub.f32 1.0, %v383
        %v385 = vmul.f32 %v382, %v384
        %v386 = vadd.f32 %v382, %v385
        %vm387 = vweird.f32 %v380
        %vm388 = vweird.f32 %v382
        %vm389 = vmor %vm387, %vm388
        %v390 = vsel %vm389, %v382, %v386
        %v391 = vand.u32 2147483647, %v380
        %vm392 = vcmp.eq.f32.partialorder %v391, 8.507059e+37
        %v393 = vand.u32 %v380, 2147483648
        %v394 = vor.u32 1.1754944e-38, %v393
        %v395 = vsel %vm392, %v394, %v390
        %v396 = vmul.f32 1.0, %v395
        %v397 = vrcp.pop %v381
        %v398 = vmul.f32 %v381, %v397
        %v399 = vsub.f32 1.0, %v398
        %v400 = vmul.f32 %v397, %v399
        %v401 = vadd.f32 %v397, %v400
        %vm402 = vweird.f32 %v381
        %vm403 = vweird.f32 %v397
        %vm404 = vmor %vm402, %vm403
        %v405 = vsel %vm404, %v397, %v401
        %v406 = vand.u32 2147483647, %v381
        %vm407 = vcmp.eq.f32.partialorder %v406, 8.507059e+37
        %v408 = vand.u32 %v381, 2147483648
        %v409 = vor.u32 1.1754944e-38, %v408
        %v410 = vsel %vm407, %v409, %v405
        %v411 = vmul.f32 1.0, %v410
        %v412 = vmul.f32 %v372, %v396
        %v413 = vmul.f32 %v373, %v411
        %vm414 = vcmask 273408
        %415 = vst.msk [vmem:[#allocation2] sm:$0xf] %vm414, 0.0
        %vm416 = vcmask 552464
        %417 = vst.msk [vmem:[#allocation2 + $0x4] sm:$0xf] %vm416, 0.0
        %v420 = vrot.slane %v413, 4
        %v421 = vsel %vm313, %v412, %v420
        %422 = vrot.lane.b32.xlu0 %v421, 34
        %v423 = vpop.permute.xlu0 %422
        %v424 = vrot.slane %v423, 4
        %vm425 = vcmask 277504
        %v426 = vsel %vm425, %v424, %v423
        %vm428 = vcmask 1043728
        %vm429 = vcmask 539652
        %vm430 = vmor %vm429, %vm428
        %431 = vst.msk [vmem:[#allocation2] sm:$0xff] %vm430, %v426
        %s432 = scalar_lea.vmem [#allocation2], 8
        %vm433 = vcmask 11264
        %434 = vst.msk [vmem:[%s432] sm:$0xf] %vm433, 0.0
        %vm435 = vcmask 552208
        %436 = vst.msk [vmem:[%s432 + $0x4] sm:$0xf] %vm435, 0.0
        %v437 = vsel %vm425, %v423, %v424
        %vm439 = vcmask 1043472
        %vm440 = vcmask 277508
        %vm441 = vmor %vm440, %vm439
        %442 = vst.msk [vmem:[%s432] sm:$0xff] %vm441, %v437
      $region52: #{ghost_conv_forward.1} parent=47 // pred_fallthru
        _
      %s443 = smul.u32 %s23, 2
      %s444 = smul.addr %s443, 4
      %s445 = scalar_lea.vmem [#allocation2], %s444
      %v446 = vld [vmem:[%s445] sm:$0xff]
      %v447 = vlaneseq
      %v448 = vand.u32 %v447, 127
      %vm449 = vcmp.lt.s32.totalorder %v448, 0
      %v450 = vsub.s32 0, %v448
      %v451 = vsel %vm449, %v450, %v448
      %v452 = vshrl.u32 %v451, 4
      %v453 = vand.u32 %v451, 15
      %v454 = vsub.s32 0, %v453
      %v455 = vsel %vm449, %v454, %v453
      %vm456 = vcmp.ne.s32.totalorder %v455, 0
      %vm457 = vcmp.lt.s32.totalorder %v455, 0
      %vm458 = vmand %vm457, %vm456
      %v459 = vadd.s32 %v455, 16
      %v460 = vsel %vm458, %v459, %v455
      %vm461 = vcmp.ge.s32.totalorder %v460, 2
      %vm462 = vcmp.lt.s32.totalorder %v460, 18
      %vm463 = vmand %vm461, %vm462
      %v464 = vsel %vm463, %v446, 0.0
      %v465 = vld [vmem:[%s4] sm:$0xf]
      %467 = vset.pattern.permute.xlu0 0
      %468 = vperm.xlu0 %467, %v465
      %v469 = vpop.permute.xlu0 %468
      %v471 = vmul.f32 %v464, %v469
      %v472 = vadd.f32 %v471, 0.0
      %474 = vst [vmem:[#allocation1] ss:$2 sm:$0xff] %v446
      %v475 = vld.sshfl [vmem:[#allocation1] sm:$0xff pattern:$0x75316420]
      %v476 = vld.sshfl [vmem:[#allocation1 + $0x8] sm:$0xff pattern:$0x75316420]
      %477 = vrot.lane.b32.xlu0 %v475, 112
      %v478 = vpop.permute.xlu0 %477
      %479 = vrot.lane.b32.xlu0 %v476, 112
      %v480 = vpop.permute.xlu0 %479
      %vm481 = vcmask 916480
      %v482 = vsel %vm481, %v478, %v480
      %v484 = vsel %vm463, %v482, 0.0
      %s485 = scalar_lea.vmem %s4, 20
      %v486 = vld [vmem:[%s485] sm:$0xf]
      %488 = vset.pattern.permute.xlu0 0
      %489 = vperm.xlu0 %488, %v486
      %v490 = vpop.permute.xlu0 %489
      %v492 = vmul.f32 %v484, %v490
      %v493 = vadd.f32 %v472, %v492
      %494 = vst [vmem:[#allocation1] ss:$2 sm:$0xff] %v446
      %v495 = vld.sshfl [vmem:[#allocation1] sm:$0xff pattern:$0x75316420]
      %v496 = vld.sshfl [vmem:[#allocation1 + $0x8] sm:$0xff pattern:$0x75316420]
      %497 = vrot.lane.b32.xlu0 %v495, 96
      %v498 = vpop.permute.xlu0 %497
      %499 = vrot.lane.b32.xlu0 %v496, 96
      %v500 = vpop.permute.xlu0 %499
      %vm501 = vcmask 785408
      %v502 = vsel %vm501, %v498, %v500
      %v504 = vsel %vm463, %v502, 0.0
      %s505 = scalar_lea.vmem %s4, 40
      %v506 = vld [vmem:[%s505] sm:$0xf]
      %508 = vset.pattern.permute.xlu0 0
      %509 = vperm.xlu0 %508, %v506
      %v510 = vpop.permute.xlu0 %509
      %v512 = vmul.f32 %v504, %v510
      %v513 = vadd.f32 %v493, %v512
      %514 = vst [vmem:[#allocation1] ss:$2 sm:$0xff] %v446
      %v515 = vld.sshfl [vmem:[#allocation1] sm:$0xff pattern:$0x75316420]
      %v516 = vld.sshfl [vmem:[#allocation1 + $0x8] sm:$0xff pattern:$0x75316420]
      %517 = vrot.lane.b32.xlu0 %v515, 80
      %v518 = vpop.permute.xlu0 %517
      %519 = vrot.lane.b32.xlu0 %v516, 80
      %v520 = vpop.permute.xlu0 %519
      %vm521 = vcmask 654336
      %v522 = vsel %vm521, %v518, %v520
      %v524 = vsel %vm463, %v522, 0.0
      %s525 = scalar_lea.vmem %s4, 60
      %v526 = vld [vmem:[%s525] sm:$0xf]
      %528 = vset.pattern.permute.xlu0 0
      %529 = vperm.xlu0 %528, %v526
      %v530 = vpop.permute.xlu0 %529
      %v532 = vmul.f32 %v524, %v530
      %v533 = vadd.f32 %v513, %v532
      %534 = vst [vmem:[#allocation1] ss:$2 sm:$0xff] %v446
      %v535 = vld.sshfl [vmem:[#allocation1] sm:$0xff pattern:$0x75316420]
      %v536 = vld.sshfl [vmem:[#allocation1 + $0x8] sm:$0xff pattern:$0x75316420]
      %537 = vrot.lane.b32.xlu0 %v535, 64
      %v538 = vpop.permute.xlu0 %537
      %539 = vrot.lane.b32.xlu0 %v536, 64
      %v540 = vpop.permute.xlu0 %539
      %vm541 = vcmask 523264
      %v542 = vsel %vm541, %v538, %v540
      %v544 = vsel %vm463, %v542, 0.0
      %s545 = scalar_lea.vmem %s4, 80
      %v546 = vld [vmem:[%s545] sm:$0xf]
      %548 = vset.pattern.permute.xlu0 0
      %549 = vperm.xlu0 %548, %v546
      %v550 = vpop.permute.xlu0 %549
      %v552 = vmul.f32 %v544, %v550
      %v553 = vadd.f32 %v533, %v552
      %v554 = vadd.s32 %v460, 1
      %vm555 = vcmp.ge.s32.totalorder %v554, 2
      %vm556 = vcmp.lt.s32.totalorder %v554, 18
      %vm557 = vmand %vm555, %vm556
      %558 = vst [vmem:[#allocation1] ss:$2 sm:$0xff] %v446
      %v559 = vld.sshfl [vmem:[#allocation1] sm:$0xff pattern:$0x75316420]
      %v560 = vld.sshfl [vmem:[#allocation1 + $0x8] sm:$0xff pattern:$0x75316420]
      %561 = vrot.lane.b32.xlu0 %v559, 127
      %v562 = vpop.permute.xlu0 %561
      %563 = vrot.lane.b32.xlu0 %v560, 127
      %v564 = vpop.permute.xlu0 %563
      %vm565 = vcmask 1039360
      %v566 = vsel %vm565, %v562, %v564
      %v568 = vsel %vm557, %v566, 0.0
      %s569 = scalar_lea.vmem %s4, 4
      %v570 = vld [vmem:[%s569] sm:$0xf]
      %572 = vset.pattern.permute.xlu0 0
      %573 = vperm.xlu0 %572, %v570
      %v574 = vpop.permute.xlu0 %573
      %v576 = vmul.f32 %v568, %v574
      %v577 = vadd.f32 %v553, %v576
      %578 = vst [vmem:[#allocation1] ss:$2 sm:$0xff] %v446
      %v579 = vld.sshfl [vmem:[#allocation1] sm:$0xff pattern:$0x75316420]
      %v580 = vld.sshfl [vmem:[#allocation1 + $0x8] sm:$0xff pattern:$0x75316420]
      %581 = vrot.lane.b32.xlu0 %v579, 111
      %v582 = vpop.permute.xlu0 %581
      %583 = vrot.lane.b32.xlu0 %v580, 111
      %v584 = vpop.permute.xlu0 %583
      %vm585 = vcmask 908288
      %v586 = vsel %vm585, %v582, %v584
      %v588 = vsel %vm557, %v586, 0.0
      %s589 = scalar_lea.vmem %s4, 24
      %v590 = vld [vmem:[%s589] sm:$0xf]
      %592 = vset.pattern.permute.xlu0 0
      %593 = vperm.xlu0 %592, %v590
      %v594 = vpop.permute.xlu0 %593
      %v596 = vmul.f32 %v588, %v594
      %v597 = vadd.f32 %v577, %v596
      %598 = vst [vmem:[#allocation1] ss:$2 sm:$0xff] %v446
      %v599 = vld.sshfl [vmem:[#allocation1] sm:$0xff pattern:$0x75316420]
      %v600 = vld.sshfl [vmem:[#allocation1 + $0x8] sm:$0xff pattern:$0x75316420]
      %601 = vrot.lane.b32.xlu0 %v599, 95
      %v602 = vpop.permute.xlu0 %601
      %603 = vrot.lane.b32.xlu0 %v600, 95
      %v604 = vpop.permute.xlu0 %603
      %vm605 = vcmask 777216
      %v606 = vsel %vm605, %v602, %v604
      %v608 = vsel %vm557, %v606, 0.0
      %s609 = scalar_lea.vmem %s4, 44
      %v610 = vld [vmem:[%s609] sm:$0xf]
      %612 = vset.pattern.permute.xlu0 0
      %613 = vperm.xlu0 %612, %v610
      %v614 = vpop.permute.xlu0 %613
      %v616 = vmul.f32 %v608, %v614
      %v617 = vadd.f32 %v597, %v616
      %618 = vst [vmem:[#allocation1] ss:$2 sm:$0xff] %v446
      %v619 = vld.sshfl [vmem:[#allocation1] sm:$0xff pattern:$0x75316420]
      %v620 = vld.sshfl [vmem:[#allocation1 + $0x8] sm:$0xff pattern:$0x75316420]
      %621 = vrot.lane.b32.xlu0 %v619, 79
      %v622 = vpop.permute.xlu0 %621
      %623 = vrot.lane.b32.xlu0 %v620, 79
      %v624 = vpop.permute.xlu0 %623
      %vm625 = vcmask 646144
      %v626 = vsel %vm625, %v622, %v624
      %v628 = vsel %vm557, %v626, 0.0
      %s629 = scalar_lea.vmem %s4, 64
      %v630 = vld [vmem:[%s629] sm:$0xf]
      %632 = vset.pattern.permute.xlu0 0
      %633 = vperm.xlu0 %632, %v630
      %v634 = vpop.permute.xlu0 %633
      %v636 = vmul.f32 %v628, %v634
      %v637 = vadd.f32 %v617, %v636
      %638 = vst [vmem:[#allocation1] ss:$2 sm:$0xff] %v446
      %v639 = vld.sshfl [vmem:[#allocation1] sm:$0xff pattern:$0x75316420]
      %v640 = vld.sshfl [vmem:[#allocation1 + $0x8] sm:$0xff pattern:$0x75316420]
      %641 = vrot.lane.b32.xlu0 %v639, 63
      %v642 = vpop.permute.xlu0 %641
      %643 = vrot.lane.b32.xlu0 %v640, 63
      %v644 = vpop.permute.xlu0 %643
      %vm645 = vcmask 515072
      %v646 = vsel %vm645, %v642, %v644
      %v648 = vsel %vm557, %v646, 0.0
      %s649 = scalar_lea.vmem %s4, 84
      %v650 = vld [vmem:[%s649] sm:$0xf]
      %652 = vset.pattern.permute.xlu0 0
      %653 = vperm.xlu0 %652, %v650
      %v654 = vpop.permute.xlu0 %653
      %v656 = vmul.f32 %v648, %v654
      %v657 = vadd.f32 %v637, %v656
      %v658 = vadd.s32 %v460, 2
      %vm659 = vcmp.ge.s32.totalorder %v658, 2
      %vm660 = vcmp.lt.s32.totalorder %v658, 18
      %vm661 = vmand %vm659, %vm660
      %662 = vst [vmem:[#allocation1] ss:$2 sm:$0xff] %v446
      %v663 = vld.sshfl [vmem:[#allocation1] sm:$0xff pattern:$0x75316420]
      %v664 = vld.sshfl [vmem:[#allocation1 + $0x8] sm:$0xff pattern:$0x75316420]
      %665 = vrot.lane.b32.xlu0 %v663, 126
      %v666 = vpop.permute.xlu0 %665
      %667 = vrot.lane.b32.xlu0 %v664, 126
      %v668 = vpop.permute.xlu0 %667
      %vm669 = vcmask 1031168
      %v670 = vsel %vm669, %v666, %v668
      %v672 = vsel %vm661, %v670, 0.0
      %s673 = scalar_lea.vmem %s4, 8
      %v674 = vld [vmem:[%s673] sm:$0xf]
      %676 = vset.pattern.permute.xlu0 0
      %677 = vperm.xlu0 %676, %v674
      %v678 = vpop.permute.xlu0 %677
      %v680 = vmul.f32 %v672, %v678
      %v681 = vadd.f32 %v657, %v680
      %682 = vst [vmem:[#allocation1] ss:$2 sm:$0xff] %v446
      %v683 = vld.sshfl [vmem:[#allocation1] sm:$0xff pattern:$0x75316420]
      %v684 = vld.sshfl [vmem:[#allocation1 + $0x8] sm:$0xff pattern:$0x75316420]
      %685 = vrot.lane.b32.xlu0 %v683, 110
      %v686 = vpop.permute.xlu0 %685
      %687 = vrot.lane.b32.xlu0 %v684, 110
      %v688 = vpop.permute.xlu0 %687
      %vm689 = vcmask 900096
      %v690 = vsel %vm689, %v686, %v688
      %v692 = vsel %vm661, %v690, 0.0
      %s693 = scalar_lea.vmem %s4, 28
      %v694 = vld [vmem:[%s693] sm:$0xf]
      %696 = vset.pattern.permute.xlu0 0
      %697 = vperm.xlu0 %696, %v694
      %v698 = vpop.permute.xlu0 %697
      %v700 = vmul.f32 %v692, %v698
      %v701 = vadd.f32 %v681, %v700
      %702 = vst [vmem:[#allocation1] ss:$2 sm:$0xff] %v446
      %v703 = vld.sshfl [vmem:[#allocation1] sm:$0xff pattern:$0x75316420]
      %v704 = vld.sshfl [vmem:[#allocation1 + $0x8] sm:$0xff pattern:$0x75316420]
      %705 = vrot.lane.b32.xlu0 %v703, 94
      %v706 = vpop.permute.xlu0 %705
      %707 = vrot.lane.b32.xlu0 %v704, 94
      %v708 = vpop.permute.xlu0 %707
      %vm709 = vcmask 769024
      %v710 = vsel %vm709, %v706, %v708
      %v712 = vsel %vm661, %v710, 0.0
      %s713 = scalar_lea.vmem %s4, 48
      %v714 = vld [vmem:[%s713] sm:$0xf]
      %716 = vset.pattern.permute.xlu0 0
      %717 = vperm.xlu0 %716, %v714
      %v718 = vpop.permute.xlu0 %717
      %v720 = vmul.f32 %v712, %v718
      %v721 = vadd.f32 %v701, %v720
      %722 = vst [vmem:[#allocation1] ss:$2 sm:$0xff] %v446
      %v723 = vld.sshfl [vmem:[#allocation1] sm:$0xff pattern:$0x75316420]
      %v724 = vld.sshfl [vmem:[#allocation1 + $0x8] sm:$0xff pattern:$0x75316420]
      %725 = vrot.lane.b32.xlu0 %v723, 78
      %v726 = vpop.permute.xlu0 %725
      %727 = vrot.lane.b32.xlu0 %v724, 78
      %v728 = vpop.permute.xlu0 %727
      %vm729 = vcmask 637952
      %v730 = vsel %vm729, %v726, %v728
      %v732 = vsel %vm661, %v730, 0.0
      %s733 = scalar_lea.vmem %s4, 68
      %v734 = vld [vmem:[%s733] sm:$0xf]
      %736 = vset.pattern.permute.xlu0 0
      %737 = vperm.xlu0 %736, %v734
      %v738 = vpop.permute.xlu0 %737
      %v740 = vmul.f32 %v732, %v738
      %v741 = vadd.f32 %v721, %v740
      %742 = vst [vmem:[#allocation1] ss:$2 sm:$0xff] %v446
      %v743 = vld.sshfl [vmem:[#allocation1] sm:$0xff pattern:$0x75316420]
      %v744 = vld.sshfl [vmem:[#allocation1 + $0x8] sm:$0xff pattern:$0x75316420]
      %745 = vrot.lane.b32.xlu0 %v743, 62
      %v746 = vpop.permute.xlu0 %745
      %747 = vrot.lane.b32.xlu0 %v744, 62
      %v748 = vpop.permute.xlu0 %747
      %vm749 = vcmask 506880
      %v750 = vsel %vm749, %v746, %v748
      %v752 = vsel %vm661, %v750, 0.0
      %s753 = scalar_lea.vmem %s4, 88
      %v754 = vld [vmem:[%s753] sm:$0xf]
      %756 = vset.pattern.permute.xlu0 0
      %757 = vperm.xlu0 %756, %v754
      %v758 = vpop.permute.xlu0 %757
      %v760 = vmul.f32 %v752, %v758
      %v761 = vadd.f32 %v741, %v760
      %v762 = vadd.s32 %v460, 3
      %vm763 = vcmp.ge.s32.totalorder %v762, 2
      %vm764 = vcmp.lt.s32.totalorder %v762, 18
      %vm765 = vmand %vm763, %vm764
      %766 = vst [vmem:[#allocation1] ss:$2 sm:$0xff] %v446
      %v767 = vld.sshfl [vmem:[#allocation1] sm:$0xff pattern:$0x75316420]
      %v768 = vld.sshfl [vmem:[#allocation1 + $0x8] sm:$0xff pattern:$0x75316420]
      %769 = vrot.lane.b32.xlu0 %v767, 125
      %v770 = vpop.permute.xlu0 %769
      %771 = vrot.lane.b32.xlu0 %v768, 125
      %v772 = vpop.permute.xlu0 %771
      %vm773 = vcmask 1022976
      %v774 = vsel %vm773, %v770, %v772
      %v776 = vsel %vm765, %v774, 0.0
      %s777 = scalar_lea.vmem %s4, 12
      %v778 = vld [vmem:[%s777] sm:$0xf]
      %780 = vset.pattern.permute.xlu0 0
      %781 = vperm.xlu0 %780, %v778
      %v782 = vpop.permute.xlu0 %781
      %v784 = vmul.f32 %v776, %v782
      %v785 = vadd.f32 %v761, %v784
      %786 = vst [vmem:[#allocation1] ss:$2 sm:$0xff] %v446
      %v787 = vld.sshfl [vmem:[#allocation1] sm:$0xff pattern:$0x75316420]
      %v788 = vld.sshfl [vmem:[#allocation1 + $0x8] sm:$0xff pattern:$0x75316420]
      %789 = vrot.lane.b32.xlu0 %v787, 109
      %v790 = vpop.permute.xlu0 %789
      %791 = vrot.lane.b32.xlu0 %v788, 109
      %v792 = vpop.permute.xlu0 %791
      %vm793 = vcmask 891904
      %v794 = vsel %vm793, %v790, %v792
      %v796 = vsel %vm765, %v794, 0.0
      %s797 = scalar_lea.vmem %s4, 32
      %v798 = vld [vmem:[%s797] sm:$0xf]
      %800 = vset.pattern.permute.xlu0 0
      %801 = vperm.xlu0 %800, %v798
      %v802 = vpop.permute.xlu0 %801
      %v804 = vmul.f32 %v796, %v802
      %v805 = vadd.f32 %v785, %v804
      %806 = vst [vmem:[#allocation1] ss:$2 sm:$0xff] %v446
      %v807 = vld.sshfl [vmem:[#allocation1] sm:$0xff pattern:$0x75316420]
      %v808 = vld.sshfl [vmem:[#allocation1 + $0x8] sm:$0xff pattern:$0x75316420]
      %809 = vrot.lane.b32.xlu0 %v807, 93
      %v810 = vpop.permute.xlu0 %809
      %811 = vrot.lane.b32.xlu0 %v808, 93
      %v812 = vpop.permute.xlu0 %811
      %vm813 = vcmask 760832
      %v814 = vsel %vm813, %v810, %v812
      %v816 = vsel %vm765, %v814, 0.0
      %s817 = scalar_lea.vmem %s4, 52
      %v818 = vld [vmem:[%s817] sm:$0xf]
      %820 = vset.pattern.permute.xlu0 0
      %821 = vperm.xlu0 %820, %v818
      %v822 = vpop.permute.xlu0 %821
      %v824 = vmul.f32 %v816, %v822
      %v825 = vadd.f32 %v805, %v824
      %826 = vst [vmem:[#allocation1] ss:$2 sm:$0xff] %v446
      %v827 = vld.sshfl [vmem:[#allocation1] sm:$0xff pattern:$0x75316420]
      %v828 = vld.sshfl [vmem:[#allocation1 + $0x8] sm:$0xff pattern:$0x75316420]
      %829 = vrot.lane.b32.xlu0 %v827, 77
      %v830 = vpop.permute.xlu0 %829
      %831 = vrot.lane.b32.xlu0 %v828, 77
      %v832 = vpop.permute.xlu0 %831
      %vm833 = vcmask 629760
      %v834 = vsel %vm833, %v830, %v832
      %v836 = vsel %vm765, %v834, 0.0
      %s837 = scalar_lea.vmem %s4, 72
      %v838 = vld [vmem:[%s837] sm:$0xf]
      %840 = vset.pattern.permute.xlu0 0
      %841 = vperm.xlu0 %840, %v838
      %v842 = vpop.permute.xlu0 %841
      %v844 = vmul.f32 %v836, %v842
      %v845 = vadd.f32 %v825, %v844
      %846 = vst [vmem:[#allocation1] ss:$2 sm:$0xff] %v446
      %v847 = vld.sshfl [vmem:[#allocation1] sm:$0xff pattern:$0x75316420]
      %v848 = vld.sshfl [vmem:[#allocation1 + $0x8] sm:$0xff pattern:$0x75316420]
      %849 = vrot.lane.b32.xlu0 %v847, 61
      %v850 = vpop.permute.xlu0 %849
      %851 = vrot.lane.b32.xlu0 %v848, 61
      %v852 = vpop.permute.xlu0 %851
      %vm853 = vcmask 498688
      %v854 = vsel %vm853, %v850, %v852
      %v856 = vsel %vm765, %v854, 0.0
      %s857 = scalar_lea.vmem %s4, 92
      %v858 = vld [vmem:[%s857] sm:$0xf]
      %860 = vset.pattern.permute.xlu0 0
      %861 = vperm.xlu0 %860, %v858
      %v862 = vpop.permute.xlu0 %861
      %v864 = vmul.f32 %v856, %v862
      %v865 = vadd.f32 %v845, %v864
      %v866 = vadd.s32 %v460, 4
      %vm867 = vcmp.ge.s32.totalorder %v866, 2
      %vm868 = vcmp.lt.s32.totalorder %v866, 18
      %vm869 = vmand %vm867, %vm868
      %870 = vst [vmem:[#allocation1] ss:$2 sm:$0xff] %v446
      %v871 = vld.sshfl [vmem:[#allocation1] sm:$0xff pattern:$0x75316420]
      %v872 = vld.sshfl [vmem:[#allocation1 + $0x8] sm:$0xff pattern:$0x75316420]
      %873 = vrot.lane.b32.xlu0 %v871, 124
      %v874 = vpop.permute.xlu0 %873
      %875 = vrot.lane.b32.xlu0 %v872, 124
      %v876 = vpop.permute.xlu0 %875
      %vm877 = vcmask 1014784
      %v878 = vsel %vm877, %v874, %v876
      %v880 = vsel %vm869, %v878, 0.0
      %s881 = scalar_lea.vmem %s4, 16
      %v882 = vld [vmem:[%s881] sm:$0xf]
      %884 = vset.pattern.permute.xlu0 0
      %885 = vperm.xlu0 %884, %v882
      %v886 = vpop.permute.xlu0 %885
      %v888 = vmul.f32 %v880, %v886
      %v889 = vadd.f32 %v865, %v888
      %890 = vst [vmem:[#allocation1] ss:$2 sm:$0xff] %v446
      %v891 = vld.sshfl [vmem:[#allocation1] sm:$0xff pattern:$0x75316420]
      %v892 = vld.sshfl [vmem:[#allocation1 + $0x8] sm:$0xff pattern:$0x75316420]
      %893 = vrot.lane.b32.xlu0 %v891, 108
      %v894 = vpop.permute.xlu0 %893
      %895 = vrot.lane.b32.xlu0 %v892, 108
      %v896 = vpop.permute.xlu0 %895
      %vm897 = vcmask 883712
      %v898 = vsel %vm897, %v894, %v896
      %v900 = vsel %vm869, %v898, 0.0
      %s901 = scalar_lea.vmem %s4, 36
      %v902 = vld [vmem:[%s901] sm:$0xf]
      %904 = vset.pattern.permute.xlu0 0
      %905 = vperm.xlu0 %904, %v902
      %v906 = vpop.permute.xlu0 %905
      %v908 = vmul.f32 %v900, %v906
      %v909 = vadd.f32 %v889, %v908
      %910 = vst [vmem:[#allocation1] ss:$2 sm:$0xff] %v446
      %v911 = vld.sshfl [vmem:[#allocation1] sm:$0xff pattern:$0x75316420]
      %v912 = vld.sshfl [vmem:[#allocation1 + $0x8] sm:$0xff pattern:$0x75316420]
      %913 = vrot.lane.b32.xlu0 %v911, 92
      %v914 = vpop.permute.xlu0 %913
      %915 = vrot.lane.b32.xlu0 %v912, 92
      %v916 = vpop.permute.xlu0 %915
      %vm917 = vcmask 752640
      %v918 = vsel %vm917, %v914, %v916
      %v920 = vsel %vm869, %v918, 0.0
      %s921 = scalar_lea.vmem %s4, 56
      %v922 = vld [vmem:[%s921] sm:$0xf]
      %924 = vset.pattern.permute.xlu0 0
      %925 = vperm.xlu0 %924, %v922
      %v926 = vpop.permute.xlu0 %925
      %v928 = vmul.f32 %v920, %v926
      %v929 = vadd.f32 %v909, %v928
      %930 = vst [vmem:[#allocation1] ss:$2 sm:$0xff] %v446
      %v931 = vld.sshfl [vmem:[#allocation1] sm:$0xff pattern:$0x75316420]
      %v932 = vld.sshfl [vmem:[#allocation1 + $0x8] sm:$0xff pattern:$0x75316420]
      %933 = vrot.lane.b32.xlu0 %v931, 76
      %v934 = vpop.permute.xlu0 %933
      %935 = vrot.lane.b32.xlu0 %v932, 76
      %v936 = vpop.permute.xlu0 %935
      %vm937 = vcmask 621568
      %v938 = vsel %vm937, %v934, %v936
      %v940 = vsel %vm869, %v938, 0.0
      %s941 = scalar_lea.vmem %s4, 76
      %v942 = vld [vmem:[%s941] sm:$0xf]
      %944 = vset.pattern.permute.xlu0 0
      %945 = vperm.xlu0 %944, %v942
      %v946 = vpop.permute.xlu0 %945
      %v948 = vmul.f32 %v940, %v946
      %v949 = vadd.f32 %v929, %v948
      %950 = vst [vmem:[#allocation1] ss:$2 sm:$0xff] %v446
      %v951 = vld.sshfl [vmem:[#allocation1] sm:$0xff pattern:$0x75316420]
      %v952 = vld.sshfl [vmem:[#allocation1 + $0x8] sm:$0xff pattern:$0x75316420]
      %953 = vrot.lane.b32.xlu0 %v951, 60
      %v954 = vpop.permute.xlu0 %953
      %955 = vrot.lane.b32.xlu0 %v952, 60
      %v956 = vpop.permute.xlu0 %955
      %vm957 = vcmask 490496
      %v958 = vsel %vm957, %v954, %v956
      %v960 = vsel %vm869, %v958, 0.0
      %s961 = scalar_lea.vmem %s4, 96
      %v962 = vld [vmem:[%s961] sm:$0xf]
      %964 = vset.pattern.permute.xlu0 0
      %965 = vperm.xlu0 %964, %v962
      %v966 = vpop.permute.xlu0 %965
      %v968 = vmul.f32 %v960, %v966
      %v969 = vadd.f32 %v949, %v968
      %v970 = vld [vmem:[%s5] sm:$0xf]
      %972 = vset.pattern.permute.xlu0 0
      %973 = vperm.xlu0 %972, %v970
      %v974 = vpop.permute.xlu0 %973
      %v976 = vmul.f32 %v969, %v974
      %v977 = vld [vmem:[%s6] sm:$0xf]
      %979 = vset.pattern.permute.xlu0 0
      %980 = vperm.xlu0 %979, %v977
      %v981 = vpop.permute.xlu0 %980
      %v983 = vadd.f32 %v976, %v981
      %v984 = vxor.u32 %v983, 2147483648
      %v985 = vmul.f32 %v984, 1.442695
      %v986 = vpow.pop %v985
      %v987 = vadd.f32 %v986, 1.0
      %v988 = vrcp.pop %v987
      %v989 = vmul.f32 %v987, %v988
      %v990 = vsub.f32 1.0, %v989
      %v991 = vmul.f32 %v988, %v990
      %v992 = vadd.f32 %v988, %v991
      %vm993 = vweird.f32 %v987
      %vm994 = vweird.f32 %v988
      %vm995 = vmor %vm993, %vm994
      %v996 = vsel %vm995, %v988, %v992
      %v997 = vand.u32 2147483647, %v987
      %vm998 = vcmp.eq.f32.partialorder %v997, 8.507059e+37
      %v999 = vand.u32 %v987, 2147483648
      %v1000 = vor.u32 1.1754944e-38, %v999
      %v1001 = vsel %vm998, %v1000, %v996
      %v1002 = vmul.f32 1.0, %v1001
      %v1003 = vmul.f32 %v983, %v1002
      %1004 = vst [vmem:[#allocation1] ss:$2 sm:$0xff] %v446
      %v1005 = vld.sshfl [vmem:[#allocation1] sm:$0xff pattern:$0x75316420]
      %v1006 = vld.sshfl [vmem:[#allocation1 + $0x8] sm:$0xff pattern:$0x75316420]
      %v1010 = vrot.slane %v1003, 4
      %1011 = vrot.lane.b32.xlu0 %v1010, 34
      %v1012 = vpop.permute.xlu0 %1011
      %vm1014 = vcmask 1043456
      %v1015 = vsel %vm1014, %v1005, %v1012
      %v1016 = vsel %vm1014, %v1006, %v1012
      %1019 = vrot.lane.b32.xlu0 %v1015, 94
      %v1020 = vpop.permute.xlu0 %1019
      %1021 = vrot.lane.b32.xlu0 %v1016, 94
      %v1022 = vpop.permute.xlu0 %1021
      %v1023 = vsel %vm709, %v1020, %v1022
      %1025 = vst [vmem:[%s298] sm:$0xff] %v1023
      %p1026 = scmp.lt.s32.totalorder %s22, 1
      %s1027 = scalar_select %p1026, %s22, 1
      %p1028 = scmp.lt.s32.totalorder %s23, 1
      %s1029 = scalar_select %p1028, %s23, 1
      %s1030 = smul.addr %s1027, 2
      %s1031 = sadd.s32 %s1029, %s1030
      %s1032 = smul.addr %s1031, 8
      %s1033 = scalar_lea.vmem %s7, %s1032
      // Predicated region
      $region53: #{ghost_conv_forward.1} parent=47 // pred_check
        %p1034 = pneg %p202
      $region54: #{ghost_conv_forward.1} parent=47 // pred_check_branch
        %1036 = sbr.rel (%p1034) target = $region56
      $region55: #{ghost_conv_forward.1} parent=47 // pred_region
        _
      $region56: #{ghost_conv_forward.1} parent=47 // pred_fallthru
        _
    $region48: #{ghost_conv_forward.1} parent=5 // pred_fallthru
      _
    %p1037 = scmp.le.s32.totalorder 2, %s13
    // Predicated region
    $region57: #{ghost_conv_forward.1} parent=5 // pred_check
      %p1038 = pneg %p1037
    $region58: #{ghost_conv_forward.1} parent=5 // pred_check_branch
      %1040 = sbr.rel (%p1038) target = $region60
    $region59: #{ghost_conv_forward.1} parent=5 // pred_region
      %s1041 = ssub.s32 %s13, 2
      // Predicated region
      $region61: #{ghost_conv_forward.1} parent=59 // pred_check
        %p1042 = pneg %p208
      $region62: #{ghost_conv_forward.1} parent=59 // pred_check_branch
        %1044 = sbr.rel (%p1042) target = $region64
      $region63: #{ghost_conv_forward.1} parent=59 // pred_region
        %p1045 = scmp.lt.s32.totalorder %s24, 1
        %s1046 = scalar_select %p1045, %s24, 1
        %p1047 = scmp.lt.s32.totalorder %s25, 1
        %s1048 = scalar_select %p1047, %s25, 1
        %s1049 = smul.addr %s1046, 2
        %s1050 = sadd.s32 %s1048, %s1049
        %s1051 = smul.addr %s1050, 8
        %s1052 = scalar_lea.vmem %s7, %s1051
      $region64: #{ghost_conv_forward.1} parent=59 // pred_fallthru
        _
    $region60: #{ghost_conv_forward.1} parent=5 // pred_fallthru
      _
  $region6: #{ghost_conv_forward.1} parent=0 // loop_footer
    %s17 = sadd.s32 1, %s13
  $region7: #{ghost_conv_forward.1} parent=0 // loop_footer_branch
    %12 = sbr.rel target = $region3
  $region8: #{ghost_conv_forward.1} parent=0 // loop_exit
    _

</llo_original>
